<compile_context>
chip_gen: v6e
topology: v6e:2x2x1
jax: 0.10.0
libtpu: 0.0.40
codegen_flags: <defaults>
</compile_context>

<pallas_src>
import functools

import jax
import jax.numpy as jnp
from jax.experimental import pallas as pl
from jax.experimental.pallas import tpu as pltpu

_SUBLANE = 8


def _round_up(x, m):
    return (x + m - 1) // m * m


def _anet_kernel(n_layers, *refs):
    """refs = (x, masks, w_0..w_{L-1}, b_0..b_{L-1}, out); one batch tile per call."""
    x_ref, m_ref = refs[0], refs[1]
    w_refs = refs[2:2 + n_layers]
    b_refs = refs[2 + n_layers:2 + 2 * n_layers]
    o_ref = refs[-1]

    h = x_ref[...]
    # Linear + hidden activation (ReLU) per layer, mirroring
    # nn.Sequential(Linear, act, Linear, act, ..., Softmax(dim=1)).
    for w_ref, b_ref in zip(w_refs, b_refs):
        h = jnp.dot(h, w_ref[...], preferred_element_type=jnp.float32) + b_ref[...]
        h = jnp.maximum(h, 0.0)

    # Fused Softmax(dim=1) * mask -> F.normalize(p=1, dim=1).
    # With masks >= 0 the softmax denominator cancels exactly:
    #   (softmax(h)*m) / sum(softmax(h)*m) == (e*m) / sum(e*m),  e = exp(h - max(h))
    # (epsilon clamp semantics differ only for pathologically tiny masked mass).
    e = jnp.exp(h - jnp.max(h, axis=-1, keepdims=True))
    y = e * m_ref[...]
    l1 = jnp.sum(y, axis=-1, keepdims=True)        # y >= 0 -> no abs needed
    o_ref[...] = y / jnp.maximum(l1, 1e-12)


def anet_forward(inputs, masks, weights, biases, *, block_rows=1024, min_tiles=2):
    """inputs: (B, F_in) f32, masks: (B, F_out) f32 (nonnegative).
    weights[i]: (F_i, F_{i+1}) f32 (already transposed vs. torch Linear),
    biases[i]: (F_{i+1},) or (1, F_{i+1}) f32."""
    n_layers = len(weights)
    batch, f_in = inputs.shape
    f_out = weights[-1].shape[1]
    dims = [f_in] + [w.shape[1] for w in weights]

    inputs = inputs.astype(jnp.float32)
    masks = masks.astype(jnp.float32)
    weights = [w.astype(jnp.float32) for w in weights]
    biases = [b.reshape(1, -1).astype(jnp.float32) for b in biases]

    # Batch tiling: big tiles amortize the ~0.35us/grid-step overhead (mem-bound
    # efficiency ~85% of HBM roofline at >=512-row tiles); min_tiles=2 keeps the
    # "parallel" batch axis occupying both TensorCores on v7x.  Feature dims are
    # <=128 lanes, so even tb=2048 is only a few MiB of double-buffered VMEM --
    # no vmem_limit_bytes override needed on any generation.
    tb = min(block_rows, _round_up(batch, _SUBLANE))
    if min_tiles > 1 and batch >= min_tiles * _SUBLANE:
        tb = min(tb, _round_up(-(-batch // min_tiles), _SUBLANE))
    batch_p = _round_up(batch, tb)
    num_tiles = batch_p // tb

    if batch_p != batch:
        # Rare path: pad batch rows only (never features).  Padded rows have
        # mask == 0 -> output 0, and are sliced off below.
        pad = batch_p - batch
        inputs = jnp.concatenate([inputs, jnp.zeros((pad, f_in), jnp.float32)], 0)
        masks = jnp.concatenate([masks, jnp.zeros((pad, f_out), jnp.float32)], 0)

    in_specs = (
        [pl.BlockSpec((tb, f_in), lambda i: (i, 0)),         # x: per-tile rows
         pl.BlockSpec((tb, f_out), lambda i: (i, 0))]        # masks: per-tile rows
        + [pl.BlockSpec((dims[k], dims[k + 1]), lambda i: (0, 0))   # weights: resident
           for k in range(n_layers)]
        + [pl.BlockSpec((1, dims[k + 1]), lambda i: (0, 0))          # biases: resident
           for k in range(n_layers)]
    )
    out_spec = pl.BlockSpec((tb, f_out), lambda i: (i, 0))

    # Advisory cost hint for XLA's scheduler around this tiny custom call.
    flops = 2 * batch_p * sum(dims[k] * dims[k + 1] for k in range(n_layers))
    bytes_accessed = 4 * (batch_p * (f_in + 2 * f_out)
                          + sum(dims[k] * dims[k + 1] + dims[k + 1]
                                for k in range(n_layers)))
    cost = pl.CostEstimate(flops=flops,
                           transcendentals=batch_p * f_out,
                           bytes_accessed=bytes_accessed)

    out = pl.pallas_call(
        functools.partial(_anet_kernel, n_layers),
        out_shape=jax.ShapeDtypeStruct((batch_p, f_out), jnp.float32),
        grid=(num_tiles,),
        in_specs=in_specs,
        out_specs=out_spec,
        compiler_params=pltpu.CompilerParams(
            dimension_semantics=("parallel",)),   # shard batch tiles across TCs (v7x)
        cost_estimate=cost,
    )(inputs, masks, *weights, *biases)

    return out if batch_p == batch else out[:batch]


def anet_reference(inputs, masks, weights, biases):
    h = inputs
    for w, b in zip(weights, biases):
        h = jnp.maximum(h @ w + b.reshape(1, -1), 0.0)
    p = jax.nn.softmax(h, axis=1)
    y = p * masks
    return y / jnp.maximum(jnp.sum(jnp.abs(y), axis=1, keepdims=True), 1e-12)


if __name__ == "__main__":
    key = jax.random.PRNGKey(0)

    # layer_sizes as the torch module would receive them: [in, hidden, out]
    layer_sizes = [32, 64, 16]
    batch = 512   # -> two 256-row tiles with min_tiles=2 (exercises grid/megacore path)

    # Deterministic init matching torch Linear's U(-1/sqrt(in), 1/sqrt(in)) scheme.
    # Params are built once, outside jit (no per-call packing).
    weights, biases = [], []
    for i in range(len(layer_sizes) - 1):
        fan_in, fan_out = layer_sizes[i], layer_sizes[i + 1]
        key, kw, kb = jax.random.split(key, 3)
        bound = 1.0 / (fan_in ** 0.5)
        weights.append(jax.random.uniform(
            kw, (fan_in, fan_out), jnp.float32, minval=-bound, maxval=bound))
        biases.append(jax.random.uniform(
            kb, (1, fan_out), jnp.float32, minval=-bound, maxval=bound))

    key, kx, km = jax.random.split(key, 3)
    x = jax.random.normal(kx, (batch, layer_sizes[0]), jnp.float32)
    # Binary legality masks, as the module's forward expects.
    masks = (jax.random.uniform(km, (batch, layer_sizes[-1])) > 0.3).astype(jnp.float32)

    # TODO(synk): training utilities (MSELoss, optimizer, do_training, save) are
    # host-side torch plumbing and are intentionally not translated.
    fwd = jax.jit(anet_forward)
    out = jax.block_until_ready(fwd(x, masks, weights, biases))

    ref = anet_reference(x, masks, weights, biases)
    assert out.shape == (batch, layer_sizes[-1])
    assert jnp.allclose(out, ref, atol=1e-5, rtol=1e-5), "mismatch vs pure-JAX reference"

    print("KERNEL_OK")
</pallas_src>

<mosaic_0001>
module attributes {stable_mosaic.version = 11 : i64} {
  func.func @_anet_kernel(%arg0: i32, %arg1: memref<256x32xf32, #tpu.memory_space<vmem>>, %arg2: memref<256x16xf32, #tpu.memory_space<vmem>>, %arg3: memref<32x64xf32, #tpu.memory_space<vmem>>, %arg4: memref<64x16xf32, #tpu.memory_space<vmem>>, %arg5: memref<1x64xf32, #tpu.memory_space<vmem>>, %arg6: memref<1x16xf32, #tpu.memory_space<vmem>>, %arg7: memref<256x16xf32, #tpu.memory_space<vmem>>) attributes {dimension_semantics = [#tpu.dimension_semantics<parallel>], iteration_bounds = array<i64: 2>, scalar_prefetch = 0 : i64, scratch_operands = 0 : i64, tpu.core_type = #tpu.core_type<tc>, window_params = [{transform_indices = @transform_0, window_bounds = array<i64: 256, 32>}, {transform_indices = @transform_1, window_bounds = array<i64: 256, 16>}, {pipeline_mode = #tpu.pipeline_mode<synchronous>, transform_indices = @transform_2, window_bounds = array<i64: 32, 64>}, {pipeline_mode = #tpu.pipeline_mode<synchronous>, transform_indices = @transform_3, window_bounds = array<i64: 64, 16>}, {pipeline_mode = #tpu.pipeline_mode<synchronous>, transform_indices = @transform_4, window_bounds = array<i64: 1, 64>}, {pipeline_mode = #tpu.pipeline_mode<synchronous>, transform_indices = @transform_5, window_bounds = array<i64: 1, 16>}, {transform_indices = @transform_6, window_bounds = array<i64: 256, 16>}]} {
    %c0 = arith.constant 0 : index
    %c0_0 = arith.constant 0 : index
    %0 = vector.load %arg1[%c0, %c0_0] : memref<256x32xf32, #tpu.memory_space<vmem>>, vector<256x32xf32>
    %c0_1 = arith.constant 0 : index
    %c0_2 = arith.constant 0 : index
    %1 = vector.load %arg3[%c0_1, %c0_2] : memref<32x64xf32, #tpu.memory_space<vmem>>, vector<32x64xf32>
    %cst = arith.constant dense<0.000000e+00> : vector<256x64xf32>
    %2 = tpu.matmul %0, %1, %cst {dimension_numbers = #tpu.dot_dimension_numbers<[1], [0], [0], [1], [0, 0, 1, 1], [], []>} : vector<256x32xf32>, vector<32x64xf32>, vector<256x64xf32> -> vector<256x64xf32>
    %c0_3 = arith.constant 0 : index
    %c0_4 = arith.constant 0 : index
    %3 = vector.load %arg5[%c0_3, %c0_4] : memref<1x64xf32, #tpu.memory_space<vmem>>, vector<1x64xf32>
    %4 = vector.broadcast %3 : vector<1x64xf32> to vector<256x64xf32>
    %5 = arith.addf %2, %4 : vector<256x64xf32>
    %cst_5 = arith.constant 0.000000e+00 : f32
    %6 = vector.broadcast %cst_5 : f32 to vector<256x64xf32>
    %7 = arith.maximumf %5, %6 : vector<256x64xf32>
    %c0_6 = arith.constant 0 : index
    %c0_7 = arith.constant 0 : index
    %8 = vector.load %arg4[%c0_6, %c0_7] : memref<64x16xf32, #tpu.memory_space<vmem>>, vector<64x16xf32>
    %cst_8 = arith.constant dense<0.000000e+00> : vector<256x16xf32>
    %9 = tpu.matmul %7, %8, %cst_8 {dimension_numbers = #tpu.dot_dimension_numbers<[1], [0], [0], [1], [0, 0, 1, 1], [], []>} : vector<256x64xf32>, vector<64x16xf32>, vector<256x16xf32> -> vector<256x16xf32>
    %c0_9 = arith.constant 0 : index
    %c0_10 = arith.constant 0 : index
    %10 = vector.load %arg6[%c0_9, %c0_10] : memref<1x16xf32, #tpu.memory_space<vmem>>, vector<1x16xf32>
    %11 = vector.broadcast %10 : vector<1x16xf32> to vector<256x16xf32>
    %12 = arith.addf %9, %11 : vector<256x16xf32>
    %cst_11 = arith.constant 0.000000e+00 : f32
    %13 = vector.broadcast %cst_11 : f32 to vector<256x16xf32>
    %14 = arith.maximumf %12, %13 : vector<256x16xf32>
    %cst_12 = arith.constant dense<0xFF800000> : vector<256xf32>
    %15 = vector.multi_reduction <maximumf>, %14, %cst_12 [1] : vector<256x16xf32> to vector<256xf32>
    %16 = vector.shape_cast %15 : vector<256xf32> to vector<256x1xf32>
    %17 = vector.broadcast %16 : vector<256x1xf32> to vector<256x16xf32>
    %18 = arith.subf %14, %17 : vector<256x16xf32>
    %19 = math.exp %18 : vector<256x16xf32>
    %c0_13 = arith.constant 0 : index
    %c0_14 = arith.constant 0 : index
    %20 = vector.load %arg2[%c0_13, %c0_14] : memref<256x16xf32, #tpu.memory_space<vmem>>, vector<256x16xf32>
    %21 = arith.mulf %19, %20 : vector<256x16xf32>
    %cst_15 = arith.constant dense<0.000000e+00> : vector<256xf32>
    %22 = vector.multi_reduction <add>, %21, %cst_15 [1] : vector<256x16xf32> to vector<256xf32>
    %23 = vector.shape_cast %22 : vector<256xf32> to vector<256x1xf32>
    %cst_16 = arith.constant 9.99999996E-13 : f32
    %24 = vector.broadcast %cst_16 : f32 to vector<256x1xf32>
    %25 = arith.maximumf %23, %24 : vector<256x1xf32>
    %26 = vector.broadcast %25 : vector<256x1xf32> to vector<256x16xf32>
    %27 = arith.divf %21, %26 : vector<256x16xf32>
    %c0_17 = arith.constant 0 : index
    %c0_18 = arith.constant 0 : index
    %28 = vector.load %arg7[%c0_17, %c0_18] : memref<256x16xf32, #tpu.memory_space<vmem>>, vector<256x16xf32>
    tpu.vector_store %arg7[%c0_17, %c0_18], %27 {strides = array<i32>} : memref<256x16xf32, #tpu.memory_space<vmem>>, vector<256x16xf32>,
    return
  }
  func.func @transform_0(%arg0: i32) -> (i32, i32) {
    %c0_i32 = arith.constant 0 : i32
    %c0_i32_0 = arith.constant 0 : i32
    return %arg0, %c0_i32 : i32, i32
  }
  func.func @transform_1(%arg0: i32) -> (i32, i32) {
    %c0_i32 = arith.constant 0 : i32
    %c0_i32_0 = arith.constant 0 : i32
    return %arg0, %c0_i32 : i32, i32
  }
  func.func @transform_2(%arg0: i32) -> (i32, i32) {
    %c0_i32 = arith.constant 0 : i32
    %c0_i32_0 = arith.constant 0 : i32
    %c0_i32_1 = arith.constant 0 : i32
    return %c0_i32, %c0_i32_0 : i32, i32
  }
  func.func @transform_3(%arg0: i32) -> (i32, i32) {
    %c0_i32 = arith.constant 0 : i32
    %c0_i32_0 = arith.constant 0 : i32
    %c0_i32_1 = arith.constant 0 : i32
    return %c0_i32, %c0_i32_0 : i32, i32
  }
  func.func @transform_4(%arg0: i32) -> (i32, i32) {
    %c0_i32 = arith.constant 0 : i32
    %c0_i32_0 = arith.constant 0 : i32
    %c0_i32_1 = arith.constant 0 : i32
    return %c0_i32, %c0_i32_0 : i32, i32
  }
  func.func @transform_5(%arg0: i32) -> (i32, i32) {
    %c0_i32 = arith.constant 0 : i32
    %c0_i32_0 = arith.constant 0 : i32
    %c0_i32_1 = arith.constant 0 : i32
    return %c0_i32, %c0_i32_0 : i32, i32
  }
  func.func @transform_6(%arg0: i32) -> (i32, i32) {
    %c0_i32 = arith.constant 0 : i32
    %c0_i32_0 = arith.constant 0 : i32
    return %arg0, %c0_i32 : i32, i32
  }
}

</mosaic_0001>

<llo_original>
// kernel: anet_forward.1
$region0: #{anet_forward.1}
  #allocation0 [shape = 'u32[]', space=smem, size = 0x4, offset = 0x4, fixed_abs, tag = 'smem constant byte address 0x4 - core index']
  #allocation1 [shape = 'u32[144,128]{1,0:T(1,128)}', space=vmem, size = 0x12000, scoped, tag = 'internal scratch']
  %s0 = inlined_call_operand.vmem [shape: f32[512,32], index: 0, kind: input, shape index: {}]
  %s1 = inlined_call_operand.vmem [shape: f32[512,16], index: 1, kind: input, shape index: {}]
  %s2 = inlined_call_operand.vmem [shape: f32[32,64], index: 2, kind: input, shape index: {}]
  %s3 = inlined_call_operand.vmem [shape: f32[64,16], index: 3, kind: input, shape index: {}]
  %s4 = inlined_call_operand.vmem [shape: f32[1,64], index: 4, kind: input, shape index: {}]
  %s5 = inlined_call_operand.vmem [shape: f32[1,16], index: 5, kind: input, shape index: {}]
  %s6 = inlined_call_operand.vmem [shape: f32[512,16], index: 6, kind: output, shape index: {}]
  %s7 = sld [smem:[#allocation0]]
  $region57: #{anet_forward.1} parent=0
    _
  %s9 = ssub.s32 1, %s7
  %s10 = scalar_select 0, %s9, %s7
  loop: start=0, step=1, limit=4
  $region2: #{anet_forward.1} parent=0 // loop_pre_header
    _
  $region3: #{anet_forward.1} parent=0 // loop_header
    %s12 = sphi 0, %s16
    %p13 = scmp.ge.s32.totalorder %s12, 4
    %s22 = sphi 0, %s24
    %s25 = sphi 0, %s22
    %s26 = sphi 0, %s25
    %s42 = sphi 0, %s26
    %s48 = sphi 0, %s50
    %s51 = sphi 0, %s48
    %s52 = sphi 0, %s51
    %s68 = sphi 0, %s52
    %s72 = sphi 0, %s72
    %s74 = sphi 0, %s72
    %s75 = sphi 0, %s74
    %s89 = sphi 0, %s75
    %s93 = sphi 0, %s93
    %s95 = sphi 0, %s93
    %s96 = sphi 0, %s95
    %s110 = sphi 0, %s96
    %s114 = sphi 0, %s114
    %s116 = sphi 0, %s114
    %s117 = sphi 0, %s116
    %s131 = sphi 0, %s117
    %s135 = sphi 0, %s135
    %s137 = sphi 0, %s135
    %s138 = sphi 0, %s137
    %s152 = sphi 0, %s138
    %s158 = sphi 0, %s160
    %s161 = sphi 0, %s158
    %s162 = sphi 0, %s161
    %s178 = sphi 0, %s162
  $region4: #{anet_forward.1} parent=0 // loop_header_branch
    %15 = sbr.rel (%p13) target = $region8
  $region5: #{anet_forward.1} parent=0 // loop_body
    %s17 = ssub.s32 %s12, 1
    %s18 = ssub.s32 %s12, 2
    %s19 = sadd.s32 %s12, 1
    %s20 = ssub.s32 %s12, %s19
    %p21 = scmp.eq.s32.totalorder %s20, 0
    %s23 = sadd.s32 %s22, 1
    %s24 = scalar_select %p21, %s22, %s23
    %p27 = pneg %p21
    %p28 = scmp.eq.s32.totalorder %s12, 1
    %p29 = por %p27, %p28
    %p30 = scmp.ne.s32.totalorder %s22, %s25
    %p31 = scmp.eq.s32.totalorder %s12, 0
    %p32 = por %p30, %p31
    %p33 = scmp.ne.s32.totalorder %s22, %s25
    %p34 = scmp.eq.s32.totalorder %s17, 1
    %p35 = por %p33, %p34
    %p36 = scmp.ne.s32.totalorder %s25, %s26
    %p37 = scmp.eq.s32.totalorder %s17, 0
    %p38 = por %p36, %p37
    %p39 = scmp.ne.s32.totalorder %s25, %s26
    %p40 = scmp.eq.s32.totalorder %s18, 1
    %p41 = por %p39, %p40
    %p43 = scmp.ne.s32.totalorder %s26, %s42
    %p44 = scmp.eq.s32.totalorder %s18, 0
    %p45 = por %p43, %p44
    %s46 = ssub.s32 %s12, %s19
    %p47 = scmp.eq.s32.totalorder %s46, 0
    %s49 = sadd.s32 %s48, 1
    %s50 = scalar_select %p47, %s48, %s49
    %p53 = pneg %p47
    %p54 = scmp.eq.s32.totalorder %s12, 1
    %p55 = por %p53, %p54
    %p56 = scmp.ne.s32.totalorder %s48, %s51
    %p57 = scmp.eq.s32.totalorder %s12, 0
    %p58 = por %p56, %p57
    %p59 = scmp.ne.s32.totalorder %s48, %s51
    %p60 = scmp.eq.s32.totalorder %s17, 1
    %p61 = por %p59, %p60
    %p62 = scmp.ne.s32.totalorder %s51, %s52
    %p63 = scmp.eq.s32.totalorder %s17, 0
    %p64 = por %p62, %p63
    %p65 = scmp.ne.s32.totalorder %s51, %s52
    %p66 = scmp.eq.s32.totalorder %s18, 1
    %p67 = por %p65, %p66
    %p69 = scmp.ne.s32.totalorder %s52, %s68
    %p70 = scmp.eq.s32.totalorder %s18, 0
    %p71 = por %p69, %p70
    %s73 = sadd.s32 %s72, 1
    %p76 = scmp.eq.s32.totalorder %s12, 1
    %p77 = scmp.ne.s32.totalorder %s72, %s74
    %p78 = scmp.eq.s32.totalorder %s12, 0
    %p79 = por %p77, %p78
    %p80 = scmp.ne.s32.totalorder %s72, %s74
    %p81 = scmp.eq.s32.totalorder %s17, 1
    %p82 = por %p80, %p81
    %p83 = scmp.ne.s32.totalorder %s74, %s75
    %p84 = scmp.eq.s32.totalorder %s17, 0
    %p85 = por %p83, %p84
    %p86 = scmp.ne.s32.totalorder %s74, %s75
    %p87 = scmp.eq.s32.totalorder %s18, 1
    %p88 = por %p86, %p87
    %p90 = scmp.ne.s32.totalorder %s75, %s89
    %p91 = scmp.eq.s32.totalorder %s18, 0
    %p92 = por %p90, %p91
    %s94 = sadd.s32 %s93, 1
    %p97 = scmp.eq.s32.totalorder %s12, 1
    %p98 = scmp.ne.s32.totalorder %s93, %s95
    %p99 = scmp.eq.s32.totalorder %s12, 0
    %p100 = por %p98, %p99
    %p101 = scmp.ne.s32.totalorder %s93, %s95
    %p102 = scmp.eq.s32.totalorder %s17, 1
    %p103 = por %p101, %p102
    %p104 = scmp.ne.s32.totalorder %s95, %s96
    %p105 = scmp.eq.s32.totalorder %s17, 0
    %p106 = por %p104, %p105
    %p107 = scmp.ne.s32.totalorder %s95, %s96
    %p108 = scmp.eq.s32.totalorder %s18, 1
    %p109 = por %p107, %p108
    %p111 = scmp.ne.s32.totalorder %s96, %s110
    %p112 = scmp.eq.s32.totalorder %s18, 0
    %p113 = por %p111, %p112
    %s115 = sadd.s32 %s114, 1
    %p118 = scmp.eq.s32.totalorder %s12, 1
    %p119 = scmp.ne.s32.totalorder %s114, %s116
    %p120 = scmp.eq.s32.totalorder %s12, 0
    %p121 = por %p119, %p120
    %p122 = scmp.ne.s32.totalorder %s114, %s116
    %p123 = scmp.eq.s32.totalorder %s17, 1
    %p124 = por %p122, %p123
    %p125 = scmp.ne.s32.totalorder %s116, %s117
    %p126 = scmp.eq.s32.totalorder %s17, 0
    %p127 = por %p125, %p126
    %p128 = scmp.ne.s32.totalorder %s116, %s117
    %p129 = scmp.eq.s32.totalorder %s18, 1
    %p130 = por %p128, %p129
    %p132 = scmp.ne.s32.totalorder %s117, %s131
    %p133 = scmp.eq.s32.totalorder %s18, 0
    %p134 = por %p132, %p133
    %s136 = sadd.s32 %s135, 1
    %p139 = scmp.eq.s32.totalorder %s12, 1
    %p140 = scmp.ne.s32.totalorder %s135, %s137
    %p141 = scmp.eq.s32.totalorder %s12, 0
    %p142 = por %p140, %p141
    %p143 = scmp.ne.s32.totalorder %s135, %s137
    %p144 = scmp.eq.s32.totalorder %s17, 1
    %p145 = por %p143, %p144
    %p146 = scmp.ne.s32.totalorder %s137, %s138
    %p147 = scmp.eq.s32.totalorder %s17, 0
    %p148 = por %p146, %p147
    %p149 = scmp.ne.s32.totalorder %s137, %s138
    %p150 = scmp.eq.s32.totalorder %s18, 1
    %p151 = por %p149, %p150
    %p153 = scmp.ne.s32.totalorder %s138, %s152
    %p154 = scmp.eq.s32.totalorder %s18, 0
    %p155 = por %p153, %p154
    %s156 = ssub.s32 %s12, %s19
    %p157 = scmp.eq.s32.totalorder %s156, 0
    %s159 = sadd.s32 %s158, 1
    %s160 = scalar_select %p157, %s158, %s159
    %p163 = pneg %p157
    %p164 = scmp.eq.s32.totalorder %s12, 1
    %p165 = por %p163, %p164
    %p166 = scmp.ne.s32.totalorder %s158, %s161
    %p167 = scmp.eq.s32.totalorder %s12, 0
    %p168 = por %p166, %p167
    %p169 = scmp.ne.s32.totalorder %s158, %s161
    %p170 = scmp.eq.s32.totalorder %s17, 1
    %p171 = por %p169, %p170
    %p172 = scmp.ne.s32.totalorder %s161, %s162
    %p173 = scmp.eq.s32.totalorder %s17, 0
    %p174 = por %p172, %p173
    %p175 = scmp.ne.s32.totalorder %s161, %s162
    %p176 = scmp.eq.s32.totalorder %s18, 1
    %p177 = por %p175, %p176
    %p179 = scmp.ne.s32.totalorder %s162, %s178
    %p180 = scmp.eq.s32.totalorder %s18, 0
    %p181 = por %p179, %p180
    %p182 = scmp.le.s32.totalorder 1, %s12
    %p183 = scmp.lt.s32.totalorder %s12, 3
    %p184 = pnand %p182, %p183
    %p185 = pneg %p184
    // Predicated region
    $region9: #{anet_forward.1} parent=5 // pred_check
      _
    $region10: #{anet_forward.1} parent=5 // pred_check_branch
      %187 = sbr.rel (%p184) target = $region12
    $region11: #{anet_forward.1} parent=5 // pred_region
      %s188 = ssub.s32 %s12, 1
      // Predicated region
      $region13: #{anet_forward.1} parent=11 // pred_check
        %p189 = pneg %p85
      $region14: #{anet_forward.1} parent=11 // pred_check_branch
        %191 = sbr.rel (%p189) target = $region16
      $region15: #{anet_forward.1} parent=11 // pred_region
        _
      $region16: #{anet_forward.1} parent=11 // pred_fallthru
        _
      // Predicated region
      $region17: #{anet_forward.1} parent=11 // pred_check
        %p192 = pneg %p106
      $region18: #{anet_forward.1} parent=11 // pred_check_branch
        %194 = sbr.rel (%p192) target = $region20
      $region19: #{anet_forward.1} parent=11 // pred_region
        _
      $region20: #{anet_forward.1} parent=11 // pred_fallthru
        _
      // Predicated region
      $region21: #{anet_forward.1} parent=11 // pred_check
        %p195 = pneg %p127
      $region22: #{anet_forward.1} parent=11 // pred_check_branch
        %197 = sbr.rel (%p195) target = $region24
      $region23: #{anet_forward.1} parent=11 // pred_region
        _
      $region24: #{anet_forward.1} parent=11 // pred_fallthru
        _
      // Predicated region
      $region25: #{anet_forward.1} parent=11 // pred_check
        %p198 = pneg %p148
      $region26: #{anet_forward.1} parent=11 // pred_check_branch
        %200 = sbr.rel (%p198) target = $region28
      $region27: #{anet_forward.1} parent=11 // pred_region
        _
      $region28: #{anet_forward.1} parent=11 // pred_fallthru
        _
    $region12: #{anet_forward.1} parent=5 // pred_fallthru
      _
    %p201 = scmp.lt.s32.totalorder %s12, 2
    // Predicated region
    $region29: #{anet_forward.1} parent=5 // pred_check
      %p202 = pneg %p201
    $region30: #{anet_forward.1} parent=5 // pred_check_branch
      %204 = sbr.rel (%p202) target = $region32
    $region31: #{anet_forward.1} parent=5 // pred_region
      // Predicated region
      $region33: #{anet_forward.1} parent=31 // pred_check
        %p205 = pneg %p32
      $region34: #{anet_forward.1} parent=31 // pred_check_branch
        %207 = sbr.rel (%p205) target = $region36
      $region35: #{anet_forward.1} parent=31 // pred_region
        %s208 = smul.u32 32, %s12
        %p209 = scmp.lt.s32.totalorder %s208, 63
        %s210 = scalar_select %p209, %s208, 63
        %s211 = smul.addr %s210, 8
        %s212 = scalar_lea.vmem %s0, %s211
        %s213 = smul.u32 32, %s12
      $region36: #{anet_forward.1} parent=31 // pred_fallthru
        _
      // Predicated region
      $region37: #{anet_forward.1} parent=31 // pred_check
        %p214 = pneg %p58
      $region38: #{anet_forward.1} parent=31 // pred_check_branch
        %216 = sbr.rel (%p214) target = $region40
      $region39: #{anet_forward.1} parent=31 // pred_region
        %s217 = smul.u32 32, %s12
        %p218 = scmp.lt.s32.totalorder %s217, 63
        %s219 = scalar_select %p218, %s217, 63
        %s220 = smul.addr %s219, 8
        %s221 = scalar_lea.vmem %s1, %s220
        %s222 = smul.u32 32, %s12
      $region40: #{anet_forward.1} parent=31 // pred_fallthru
        _
    $region32: #{anet_forward.1} parent=5 // pred_fallthru
      _
    %p223 = scmp.le.s32.totalorder 1, %s12
    %p224 = scmp.lt.s32.totalorder %s12, 3
    %p225 = pnand %p223, %p224
    %p226 = pneg %p225
    // Predicated region
    $region41: #{anet_forward.1} parent=5 // pred_check
      _
    $region42: #{anet_forward.1} parent=5 // pred_check_branch
      %228 = sbr.rel (%p225) target = $region44
    $region43: #{anet_forward.1} parent=5 // pred_region
      %s229 = ssub.s32 %s12, 1
      %s230 = smul.u32 32, %s17
      %p231 = scmp.lt.s32.totalorder %s230, 63
      %s232 = scalar_select %p231, %s230, 63
      %s233 = smul.addr %s232, 8
      %s234 = scalar_lea.vmem %s0, %s233
      %p235 = pneg %p38
      %p236 = pneg %p35
      %s237 = smul.u32 32, %s17
      %p238 = scmp.lt.s32.totalorder %s237, 63
      %s239 = scalar_select %p238, %s237, 63
      %s240 = smul.addr %s239, 8
      %s241 = scalar_lea.vmem %s1, %s240
      %p242 = pneg %p64
      %p243 = pneg %p61
      %p244 = pneg %p85
      %p245 = pneg %p82
      %p246 = pneg %p106
      %p247 = pneg %p103
      %p248 = pneg %p127
      %p249 = pneg %p124
      %p250 = pneg %p148
      %p251 = pneg %p145
      %p252 = pneg %p174
      %p253 = pneg %p171
      %s254 = smul.u32 32, %s17
      %p255 = scmp.lt.s32.totalorder %s254, 63
      %s256 = scalar_select %p255, %s254, 63
      %s257 = smul.addr %s256, 8
      %s258 = scalar_lea.vmem %s6, %s257
      %s259 = smul.u32 32, %s17
      %p260 = scmp.lt.s32.totalorder %s259, 63
      %s261 = scalar_select %p260, %s259, 63
      %s262 = smul.addr %s261, 8
      %s263 = scalar_lea.vmem %s0, %s262
      %s264 = smul.u32 32, %s17
      %s265 = smul.u32 32, %s17
      %p266 = scmp.lt.s32.totalorder %s265, 63
      %s267 = scalar_select %p266, %s265, 63
      %s268 = smul.addr %s267, 8
      %s269 = scalar_lea.vmem %s1, %s268
      %s270 = smul.u32 32, %s17
      %s271 = smul.u32 32, %s17
      %p272 = scmp.lt.s32.totalorder %s271, 63
      %s273 = scalar_select %p272, %s271, 63
      %s274 = smul.addr %s273, 8
      %s275 = scalar_lea.vmem %s6, %s274
      %s276 = smul.u32 32, %s17
      %v277 = vld [vmem:[%s263] sm:$0xff]
      %v278 = vld [vmem:[%s263 + $0x8] sm:$0xff]
      %v279 = vld [vmem:[%s263 + $0x10] sm:$0xff]
      %v280 = vld [vmem:[%s263 + $0x18] sm:$0xff]
      %v281 = vld [vmem:[%s263 + $0x20] sm:$0xff]
      %v282 = vld [vmem:[%s263 + $0x28] sm:$0xff]
      %v283 = vld [vmem:[%s263 + $0x30] sm:$0xff]
      %v284 = vld [vmem:[%s263 + $0x38] sm:$0xff]
      %v285 = vld [vmem:[%s263 + $0x40] sm:$0xff]
      %v286 = vld [vmem:[%s263 + $0x48] sm:$0xff]
      %v287 = vld [vmem:[%s263 + $0x50] sm:$0xff]
      %v288 = vld [vmem:[%s263 + $0x58] sm:$0xff]
      %v289 = vld [vmem:[%s263 + $0x60] sm:$0xff]
      %v290 = vld [vmem:[%s263 + $0x68] sm:$0xff]
      %v291 = vld [vmem:[%s263 + $0x70] sm:$0xff]
      %v292 = vld [vmem:[%s263 + $0x78] sm:$0xff]
      %v293 = vld [vmem:[%s263 + $0x80] sm:$0xff]
      %v294 = vld [vmem:[%s263 + $0x88] sm:$0xff]
      %v295 = vld [vmem:[%s263 + $0x90] sm:$0xff]
      %v296 = vld [vmem:[%s263 + $0x98] sm:$0xff]
      %v297 = vld [vmem:[%s263 + $0xa0] sm:$0xff]
      %v298 = vld [vmem:[%s263 + $0xa8] sm:$0xff]
      %v299 = vld [vmem:[%s263 + $0xb0] sm:$0xff]
      %v300 = vld [vmem:[%s263 + $0xb8] sm:$0xff]
      %v301 = vld [vmem:[%s263 + $0xc0] sm:$0xff]
      %v302 = vld [vmem:[%s263 + $0xc8] sm:$0xff]
      %v303 = vld [vmem:[%s263 + $0xd0] sm:$0xff]
      %v304 = vld [vmem:[%s263 + $0xd8] sm:$0xff]
      %v305 = vld [vmem:[%s263 + $0xe0] sm:$0xff]
      %v306 = vld [vmem:[%s263 + $0xe8] sm:$0xff]
      %v307 = vld [vmem:[%s263 + $0xf0] sm:$0xff]
      %v308 = vld [vmem:[%s263 + $0xf8] sm:$0xff]
      %v309 = vld [vmem:[%s2] sm:$0xff]
      %v310 = vld [vmem:[%s2 + $0x8] sm:$0xff]
      %v311 = vld [vmem:[%s2 + $0x10] sm:$0xff]
      %v312 = vld [vmem:[%s2 + $0x18] sm:$0xff]
      %v313 = vld [vmem:[%s4] sm:$0x1]
      %v315 = vlaneseq
      %v316 = vshrl.u32 %v315, 7
      %v317 = vsub.s32 0, %v316
      %v318 = vrot.slane %v313, %v317
      %vm320 = vcmask 261120
      %v322 = vsel %vm320, %v277, 0
      %v325 = vsel %vm320, %v278, 0
      %v328 = vsel %vm320, %v279, 0
      %v331 = vsel %vm320, %v280, 0
      %v334 = vsel %vm320, %v281, 0
      %v337 = vsel %vm320, %v282, 0
      %v340 = vsel %vm320, %v283, 0
      %v343 = vsel %vm320, %v284, 0
      %v346 = vsel %vm320, %v285, 0
      %v349 = vsel %vm320, %v286, 0
      %v352 = vsel %vm320, %v287, 0
      %v355 = vsel %vm320, %v288, 0
      %v358 = vsel %vm320, %v289, 0
      %v361 = vsel %vm320, %v290, 0
      %v364 = vsel %vm320, %v291, 0
      %v367 = vsel %vm320, %v292, 0
      %v370 = vsel %vm320, %v293, 0
      %v373 = vsel %vm320, %v294, 0
      %v376 = vsel %vm320, %v295, 0
      %v379 = vsel %vm320, %v296, 0
      %v382 = vsel %vm320, %v297, 0
      %v385 = vsel %vm320, %v298, 0
      %v388 = vsel %vm320, %v299, 0
      %v391 = vsel %vm320, %v300, 0
      %v394 = vsel %vm320, %v301, 0
      %v397 = vsel %vm320, %v302, 0
      %v400 = vsel %vm320, %v303, 0
      %v403 = vsel %vm320, %v304, 0
      %v406 = vsel %vm320, %v305, 0
      %v409 = vsel %vm320, %v306, 0
      %v412 = vsel %vm320, %v307, 0
      %v415 = vsel %vm320, %v308, 0
      %417 = vmatprep.subr.mxu0 0.0
      %418 = vmatpush1.msra.mxu0 0.0
      %419 = vmatprep.subr.mxu0 0.0
      %420 = vmatpush1.msra.mxu0 0.0
      %421 = vmatprep.subr.mxu0 0.0
      %422 = vmatpush1.msra.mxu0 0.0
      %423 = vmatprep.subr.mxu0 0.0
      %424 = vmatpush1.msra.mxu0 0.0
      %425 = vmatprep.subr.mxu0 0.0
      %426 = vmatpush1.msra.mxu0 0.0
      %427 = vmatprep.subr.mxu0 0.0
      %428 = vmatpush1.msra.mxu0 0.0
      %429 = vmatprep.subr.mxu0 0.0
      %430 = vmatpush1.msra.mxu0 0.0
      %431 = vmatprep.subr.mxu0 0.0
      %432 = vmatpush1.msra.mxu0 0.0
      %433 = vmatprep.subr.mxu0 0.0
      %434 = vmatpush1.msra.mxu0 0.0
      %435 = vmatprep.subr.mxu0 0.0
      %436 = vmatpush1.msra.mxu0 0.0
      %437 = vmatprep.subr.mxu0 0.0
      %438 = vmatpush1.msra.mxu0 0.0
      %439 = vmatprep.subr.mxu0 0.0
      %440 = vmatpush1.msra.mxu0 0.0
      %441 = vmatprep.subr.mxu0 0.0
      %442 = vmatpush1.msra.mxu0 %v312
      %443 = vmatprep.subr.mxu0 0.0
      %444 = vmatpush1.msra.mxu0 %v311
      %445 = vmatprep.subr.mxu0 0.0
      %446 = vmatpush1.msra.mxu0 %v310
      %447 = vmatprep.subr.mxu0 0.0
      %448 = vmatpush1.msra.mxu0 %v309
      %449 = vmatprep.subr.mxu0 0.0
      %450 = vmatpush2.msra.mxu0 0.0
      %451 = vmatprep.subr.mxu0 0.0
      %452 = vmatpush2.msra.mxu0 0.0
      %453 = vmatprep.subr.mxu0 0.0
      %454 = vmatpush2.msra.mxu0 0.0
      %455 = vmatprep.subr.mxu0 0.0
      %456 = vmatpush2.msra.mxu0 0.0
      %457 = vmatprep.subr.mxu0 0.0
      %458 = vmatpush2.msra.mxu0 0.0
      %459 = vmatprep.subr.mxu0 0.0
      %460 = vmatpush2.msra.mxu0 0.0
      %461 = vmatprep.subr.mxu0 0.0
      %462 = vmatpush2.msra.mxu0 0.0
      %463 = vmatprep.subr.mxu0 0.0
      %464 = vmatpush2.msra.mxu0 0.0
      %465 = vmatprep.subr.mxu0 0.0
      %466 = vmatpush2.msra.mxu0 0.0
      %467 = vmatprep.subr.mxu0 0.0
      %468 = vmatpush2.msra.mxu0 0.0
      %469 = vmatprep.subr.mxu0 0.0
      %470 = vmatpush2.msra.mxu0 0.0
      %471 = vmatprep.subr.mxu0 0.0
      %472 = vmatpush2.msra.mxu0 0.0
      %473 = vmatprep.subr.mxu0 0.0
      %474 = vmatpush2.msra.mxu0 0.0
      %475 = vmatprep.subr.mxu0 0.0
      %476 = vmatpush2.msra.mxu0 0.0
      %477 = vmatprep.subr.mxu0 0.0
      %478 = vmatpush2.msra.mxu0 0.0
      %479 = vmatprep.subr.mxu0 0.0
      %480 = vmatpush2.msra.mxu0 0.0
      %481 = vmatprep.mubr.f32.mxu0 0.0
      %482 = vmatmul.mubr.f32.gmra.mxu0 %v322
      %v483 = vpop.f32.mrf.mxu0
      %v484 = vadd.f32 %v318, %v483
      %v485 = vpop.f32.mrf.mxu0
      %486 = vmatprep.mubr.f32.mxu0 0.0
      %487 = vmatmul.mubr.f32.gmra.mxu0 %v325
      %v488 = vpop.f32.mrf.mxu0
      %v489 = vadd.f32 %v318, %v488
      %v490 = vpop.f32.mrf.mxu0
      %491 = vmatprep.mubr.f32.mxu0 0.0
      %492 = vmatmul.mubr.f32.gmra.mxu0 %v328
      %v493 = vpop.f32.mrf.mxu0
      %v494 = vadd.f32 %v318, %v493
      %v495 = vpop.f32.mrf.mxu0
      %496 = vmatprep.mubr.f32.mxu0 0.0
      %497 = vmatmul.mubr.f32.gmra.mxu0 %v331
      %v498 = vpop.f32.mrf.mxu0
      %v499 = vadd.f32 %v318, %v498
      %v500 = vpop.f32.mrf.mxu0
      %501 = vmatprep.mubr.f32.mxu0 0.0
      %502 = vmatmul.mubr.f32.gmra.mxu0 %v334
      %v503 = vpop.f32.mrf.mxu0
      %v504 = vadd.f32 %v318, %v503
      %v505 = vpop.f32.mrf.mxu0
      %506 = vmatprep.mubr.f32.mxu0 0.0
      %507 = vmatmul.mubr.f32.gmra.mxu0 %v337
      %v508 = vpop.f32.mrf.mxu0
      %v509 = vadd.f32 %v318, %v508
      %v510 = vpop.f32.mrf.mxu0
      %511 = vmatprep.mubr.f32.mxu0 0.0
      %512 = vmatmul.mubr.f32.gmra.mxu0 %v340
      %v513 = vpop.f32.mrf.mxu0
      %v514 = vadd.f32 %v318, %v513
      %v515 = vpop.f32.mrf.mxu0
      %516 = vmatprep.mubr.f32.mxu0 0.0
      %517 = vmatmul.mubr.f32.gmra.mxu0 %v343
      %v518 = vpop.f32.mrf.mxu0
      %v519 = vadd.f32 %v318, %v518
      %v520 = vpop.f32.mrf.mxu0
      %521 = vmatprep.mubr.f32.mxu0 0.0
      %522 = vmatmul.mubr.f32.gmra.mxu0 %v346
      %v523 = vpop.f32.mrf.mxu0
      %v524 = vadd.f32 %v318, %v523
      %v525 = vpop.f32.mrf.mxu0
      %526 = vmatprep.mubr.f32.mxu0 0.0
      %527 = vmatmul.mubr.f32.gmra.mxu0 %v349
      %v528 = vpop.f32.mrf.mxu0
      %v529 = vadd.f32 %v318, %v528
      %v530 = vpop.f32.mrf.mxu0
      %531 = vmatprep.mubr.f32.mxu0 0.0
      %532 = vmatmul.mubr.f32.gmra.mxu0 %v352
      %v533 = vpop.f32.mrf.mxu0
      %v534 = vadd.f32 %v318, %v533
      %v535 = vpop.f32.mrf.mxu0
      %536 = vmatprep.mubr.f32.mxu0 0.0
      %537 = vmatmul.mubr.f32.gmra.mxu0 %v355
      %v538 = vpop.f32.mrf.mxu0
      %v539 = vadd.f32 %v318, %v538
      %v540 = vpop.f32.mrf.mxu0
      %541 = vmatprep.mubr.f32.mxu0 0.0
      %542 = vmatmul.mubr.f32.gmra.mxu0 %v358
      %v543 = vpop.f32.mrf.mxu0
      %v544 = vadd.f32 %v318, %v543
      %v545 = vpop.f32.mrf.mxu0
      %546 = vmatprep.mubr.f32.mxu0 0.0
      %547 = vmatmul.mubr.f32.gmra.mxu0 %v361
      %v548 = vpop.f32.mrf.mxu0
      %v549 = vadd.f32 %v318, %v548
      %v550 = vpop.f32.mrf.mxu0
      %551 = vmatprep.mubr.f32.mxu0 0.0
      %552 = vmatmul.mubr.f32.gmra.mxu0 %v364
      %v553 = vpop.f32.mrf.mxu0
      %v554 = vadd.f32 %v318, %v553
      %v555 = vpop.f32.mrf.mxu0
      %556 = vmatprep.mubr.f32.mxu0 0.0
      %557 = vmatmul.mubr.f32.gmra.mxu0 %v367
      %v558 = vpop.f32.mrf.mxu0
      %v559 = vadd.f32 %v318, %v558
      %v560 = vpop.f32.mrf.mxu0
      %561 = vmatprep.mubr.f32.mxu0 0.0
      %562 = vmatmul.mubr.f32.gmra.mxu0 %v370
      %v563 = vpop.f32.mrf.mxu0
      %v564 = vadd.f32 %v318, %v563
      %v565 = vpop.f32.mrf.mxu0
      %566 = vmatprep.mubr.f32.mxu0 0.0
      %567 = vmatmul.mubr.f32.gmra.mxu0 %v373
      %v568 = vpop.f32.mrf.mxu0
      %v569 = vadd.f32 %v318, %v568
      %v570 = vpop.f32.mrf.mxu0
      %571 = vmatprep.mubr.f32.mxu0 0.0
      %572 = vmatmul.mubr.f32.gmra.mxu0 %v376
      %v573 = vpop.f32.mrf.mxu0
      %v574 = vadd.f32 %v318, %v573
      %v575 = vpop.f32.mrf.mxu0
      %576 = vmatprep.mubr.f32.mxu0 0.0
      %577 = vmatmul.mubr.f32.gmra.mxu0 %v379
      %v578 = vpop.f32.mrf.mxu0
      %v579 = vadd.f32 %v318, %v578
      %v580 = vpop.f32.mrf.mxu0
      %581 = vmatprep.mubr.f32.mxu0 0.0
      %582 = vmatmul.mubr.f32.gmra.mxu0 %v382
      %v583 = vpop.f32.mrf.mxu0
      %v584 = vadd.f32 %v318, %v583
      %v585 = vpop.f32.mrf.mxu0
      %586 = vmatprep.mubr.f32.mxu0 0.0
      %587 = vmatmul.mubr.f32.gmra.mxu0 %v385
      %v588 = vpop.f32.mrf.mxu0
      %v589 = vadd.f32 %v318, %v588
      %v590 = vpop.f32.mrf.mxu0
      %591 = vmatprep.mubr.f32.mxu0 0.0
      %592 = vmatmul.mubr.f32.gmra.mxu0 %v388
      %v593 = vpop.f32.mrf.mxu0
      %v594 = vadd.f32 %v318, %v593
      %v595 = vpop.f32.mrf.mxu0
      %596 = vmatprep.mubr.f32.mxu0 0.0
      %597 = vmatmul.mubr.f32.gmra.mxu0 %v391
      %v598 = vpop.f32.mrf.mxu0
      %v599 = vadd.f32 %v318, %v598
      %v600 = vpop.f32.mrf.mxu0
      %601 = vmatprep.mubr.f32.mxu0 0.0
      %602 = vmatmul.mubr.f32.gmra.mxu0 %v394
      %v603 = vpop.f32.mrf.mxu0
      %v604 = vadd.f32 %v318, %v603
      %v605 = vpop.f32.mrf.mxu0
      %606 = vmatprep.mubr.f32.mxu0 0.0
      %607 = vmatmul.mubr.f32.gmra.mxu0 %v397
      %v608 = vpop.f32.mrf.mxu0
      %v609 = vadd.f32 %v318, %v608
      %v610 = vpop.f32.mrf.mxu0
      %611 = vmatprep.mubr.f32.mxu0 0.0
      %612 = vmatmul.mubr.f32.gmra.mxu0 %v400
      %v613 = vpop.f32.mrf.mxu0
      %v614 = vadd.f32 %v318, %v613
      %v615 = vpop.f32.mrf.mxu0
      %616 = vmatprep.mubr.f32.mxu0 0.0
      %617 = vmatmul.mubr.f32.gmra.mxu0 %v403
      %v618 = vpop.f32.mrf.mxu0
      %v619 = vadd.f32 %v318, %v618
      %v620 = vpop.f32.mrf.mxu0
      %621 = vmatprep.mubr.f32.mxu0 0.0
      %622 = vmatmul.mubr.f32.gmra.mxu0 %v406
      %v623 = vpop.f32.mrf.mxu0
      %v624 = vadd.f32 %v318, %v623
      %v625 = vpop.f32.mrf.mxu0
      %626 = vmatprep.mubr.f32.mxu0 0.0
      %627 = vmatmul.mubr.f32.gmra.mxu0 %v409
      %v628 = vpop.f32.mrf.mxu0
      %v629 = vadd.f32 %v318, %v628
      %v630 = vpop.f32.mrf.mxu0
      %631 = vmatprep.mubr.f32.mxu0 0.0
      %632 = vmatmul.mubr.f32.gmra.mxu0 %v412
      %v633 = vpop.f32.mrf.mxu0
      %v634 = vadd.f32 %v318, %v633
      %v635 = vpop.f32.mrf.mxu0
      %636 = vmatprep.mubr.f32.mxu0 0.0
      %637 = vmatmul.mubr.f32.gmra.mxu0 %v415
      %v638 = vpop.f32.mrf.mxu0
      %v639 = vadd.f32 %v318, %v638
      %v640 = vpop.f32.mrf.mxu0
      %641 = vdwg.mxu0
      %v642 = vmax.f32 %v484, 0.0
      %v643 = vmax.f32 %v489, 0.0
      %v644 = vmax.f32 %v494, 0.0
      %v645 = vmax.f32 %v499, 0.0
      %v646 = vmax.f32 %v504, 0.0
      %v647 = vmax.f32 %v509, 0.0
      %v648 = vmax.f32 %v514, 0.0
      %v649 = vmax.f32 %v519, 0.0
      %v650 = vmax.f32 %v524, 0.0
      %v651 = vmax.f32 %v529, 0.0
      %v652 = vmax.f32 %v534, 0.0
      %v653 = vmax.f32 %v539, 0.0
      %v654 = vmax.f32 %v544, 0.0
      %v655 = vmax.f32 %v549, 0.0
      %v656 = vmax.f32 %v554, 0.0
      %v657 = vmax.f32 %v559, 0.0
      %v658 = vmax.f32 %v564, 0.0
      %v659 = vmax.f32 %v569, 0.0
      %v660 = vmax.f32 %v574, 0.0
      %v661 = vmax.f32 %v579, 0.0
      %v662 = vmax.f32 %v584, 0.0
      %v663 = vmax.f32 %v589, 0.0
      %v664 = vmax.f32 %v594, 0.0
      %v665 = vmax.f32 %v599, 0.0
      %v666 = vmax.f32 %v604, 0.0
      %v667 = vmax.f32 %v609, 0.0
      %v668 = vmax.f32 %v614, 0.0
      %v669 = vmax.f32 %v619, 0.0
      %v670 = vmax.f32 %v624, 0.0
      %v671 = vmax.f32 %v629, 0.0
      %v672 = vmax.f32 %v634, 0.0
      %v673 = vmax.f32 %v639, 0.0
      %v674 = vld [vmem:[%s3] sm:$0xff]
      %v675 = vld [vmem:[%s3 + $0x8] sm:$0xff]
      %v676 = vld [vmem:[%s3 + $0x10] sm:$0xff]
      %v677 = vld [vmem:[%s3 + $0x18] sm:$0xff]
      %v678 = vld [vmem:[%s3 + $0x20] sm:$0xff]
      %v679 = vld [vmem:[%s3 + $0x28] sm:$0xff]
      %v680 = vld [vmem:[%s3 + $0x30] sm:$0xff]
      %v681 = vld [vmem:[%s3 + $0x38] sm:$0xff]
      %v682 = vld [vmem:[%s5] sm:$0x1]
      %v684 = vlaneseq
      %v685 = vshrl.u32 %v684, 7
      %v686 = vsub.s32 0, %v685
      %v687 = vrot.slane %v682, %v686
      %vm689 = vcmask 523264
      %v691 = vsel %vm689, %v642, 0
      %v694 = vsel %vm689, %v643, 0
      %v697 = vsel %vm689, %v644, 0
      %v700 = vsel %vm689, %v645, 0
      %v703 = vsel %vm689, %v646, 0
      %v706 = vsel %vm689, %v647, 0
      %v709 = vsel %vm689, %v648, 0
      %v712 = vsel %vm689, %v649, 0
      %v715 = vsel %vm689, %v650, 0
      %v718 = vsel %vm689, %v651, 0
      %v721 = vsel %vm689, %v652, 0
      %v724 = vsel %vm689, %v653, 0
      %v727 = vsel %vm689, %v654, 0
      %v730 = vsel %vm689, %v655, 0
      %v733 = vsel %vm689, %v656, 0
      %v736 = vsel %vm689, %v657, 0
      %v739 = vsel %vm689, %v658, 0
      %v742 = vsel %vm689, %v659, 0
      %v745 = vsel %vm689, %v660, 0
      %v748 = vsel %vm689, %v661, 0
      %v751 = vsel %vm689, %v662, 0
      %v754 = vsel %vm689, %v663, 0
      %v757 = vsel %vm689, %v664, 0
      %v760 = vsel %vm689, %v665, 0
      %v763 = vsel %vm689, %v666, 0
      %v766 = vsel %vm689, %v667, 0
      %v769 = vsel %vm689, %v668, 0
      %v772 = vsel %vm689, %v669, 0
      %v775 = vsel %vm689, %v670, 0
      %v778 = vsel %vm689, %v671, 0
      %v781 = vsel %vm689, %v672, 0
      %v784 = vsel %vm689, %v673, 0
      %786 = vmatprep.subr.mxu0 0.0
      %787 = vmatpush1.msra.mxu0 0.0
      %788 = vmatprep.subr.mxu0 0.0
      %789 = vmatpush1.msra.mxu0 0.0
      %790 = vmatprep.subr.mxu0 0.0
      %791 = vmatpush1.msra.mxu0 0.0
      %792 = vmatprep.subr.mxu0 0.0
      %793 = vmatpush1.msra.mxu0 0.0
      %794 = vmatprep.subr.mxu0 0.0
      %795 = vmatpush1.msra.mxu0 0.0
      %796 = vmatprep.subr.mxu0 0.0
      %797 = vmatpush1.msra.mxu0 0.0
      %798 = vmatprep.subr.mxu0 0.0
      %799 = vmatpush1.msra.mxu0 0.0
      %800 = vmatprep.subr.mxu0 0.0
      %801 = vmatpush1.msra.mxu0 0.0
      %802 = vmatprep.subr.mxu0 0.0
      %803 = vmatpush1.msra.mxu0 %v681
      %804 = vmatprep.subr.mxu0 0.0
      %805 = vmatpush1.msra.mxu0 %v680
      %806 = vmatprep.subr.mxu0 0.0
      %807 = vmatpush1.msra.mxu0 %v679
      %808 = vmatprep.subr.mxu0 0.0
      %809 = vmatpush1.msra.mxu0 %v678
      %810 = vmatprep.subr.mxu0 0.0
      %811 = vmatpush1.msra.mxu0 %v677
      %812 = vmatprep.subr.mxu0 0.0
      %813 = vmatpush1.msra.mxu0 %v676
      %814 = vmatprep.subr.mxu0 0.0
      %815 = vmatpush1.msra.mxu0 %v675
      %816 = vmatprep.subr.mxu0 0.0
      %817 = vmatpush1.msra.mxu0 %v674
      %818 = vmatprep.subr.mxu0 0.0
      %819 = vmatpush2.msra.mxu0 0.0
      %820 = vmatprep.subr.mxu0 0.0
      %821 = vmatpush2.msra.mxu0 0.0
      %822 = vmatprep.subr.mxu0 0.0
      %823 = vmatpush2.msra.mxu0 0.0
      %824 = vmatprep.subr.mxu0 0.0
      %825 = vmatpush2.msra.mxu0 0.0
      %826 = vmatprep.subr.mxu0 0.0
      %827 = vmatpush2.msra.mxu0 0.0
      %828 = vmatprep.subr.mxu0 0.0
      %829 = vmatpush2.msra.mxu0 0.0
      %830 = vmatprep.subr.mxu0 0.0
      %831 = vmatpush2.msra.mxu0 0.0
      %832 = vmatprep.subr.mxu0 0.0
      %833 = vmatpush2.msra.mxu0 0.0
      %834 = vmatprep.subr.mxu0 0.0
      %835 = vmatpush2.msra.mxu0 0.0
      %836 = vmatprep.subr.mxu0 0.0
      %837 = vmatpush2.msra.mxu0 0.0
      %838 = vmatprep.subr.mxu0 0.0
      %839 = vmatpush2.msra.mxu0 0.0
      %840 = vmatprep.subr.mxu0 0.0
      %841 = vmatpush2.msra.mxu0 0.0
      %842 = vmatprep.subr.mxu0 0.0
      %843 = vmatpush2.msra.mxu0 0.0
      %844 = vmatprep.subr.mxu0 0.0
      %845 = vmatpush2.msra.mxu0 0.0
      %846 = vmatprep.subr.mxu0 0.0
      %847 = vmatpush2.msra.mxu0 0.0
      %848 = vmatprep.subr.mxu0 0.0
      %849 = vmatpush2.msra.mxu0 0.0
      %850 = vmatprep.mubr.f32.mxu0 0.0
      %851 = vmatmul.mubr.f32.gmra.mxu0 %v691
      %v852 = vpop.f32.mrf.mxu0
      %v853 = vadd.f32 %v687, %v852
      %v854 = vpop.f32.mrf.mxu0
      %855 = vmatprep.mubr.f32.mxu0 0.0
      %856 = vmatmul.mubr.f32.gmra.mxu0 %v694
      %v857 = vpop.f32.mrf.mxu0
      %v858 = vadd.f32 %v687, %v857
      %v859 = vpop.f32.mrf.mxu0
      %860 = vmatprep.mubr.f32.mxu0 0.0
      %861 = vmatmul.mubr.f32.gmra.mxu0 %v697
      %v862 = vpop.f32.mrf.mxu0
      %v863 = vadd.f32 %v687, %v862
      %v864 = vpop.f32.mrf.mxu0
      %865 = vmatprep.mubr.f32.mxu0 0.0
      %866 = vmatmul.mubr.f32.gmra.mxu0 %v700
      %v867 = vpop.f32.mrf.mxu0
      %v868 = vadd.f32 %v687, %v867
      %v869 = vpop.f32.mrf.mxu0
      %870 = vmatprep.mubr.f32.mxu0 0.0
      %871 = vmatmul.mubr.f32.gmra.mxu0 %v703
      %v872 = vpop.f32.mrf.mxu0
      %v873 = vadd.f32 %v687, %v872
      %v874 = vpop.f32.mrf.mxu0
      %875 = vmatprep.mubr.f32.mxu0 0.0
      %876 = vmatmul.mubr.f32.gmra.mxu0 %v706
      %v877 = vpop.f32.mrf.mxu0
      %v878 = vadd.f32 %v687, %v877
      %v879 = vpop.f32.mrf.mxu0
      %880 = vmatprep.mubr.f32.mxu0 0.0
      %881 = vmatmul.mubr.f32.gmra.mxu0 %v709
      %v882 = vpop.f32.mrf.mxu0
      %v883 = vadd.f32 %v687, %v882
      %v884 = vpop.f32.mrf.mxu0
      %885 = vmatprep.mubr.f32.mxu0 0.0
      %886 = vmatmul.mubr.f32.gmra.mxu0 %v712
      %v887 = vpop.f32.mrf.mxu0
      %v888 = vadd.f32 %v687, %v887
      %v889 = vpop.f32.mrf.mxu0
      %890 = vmatprep.mubr.f32.mxu0 0.0
      %891 = vmatmul.mubr.f32.gmra.mxu0 %v715
      %v892 = vpop.f32.mrf.mxu0
      %v893 = vadd.f32 %v687, %v892
      %v894 = vpop.f32.mrf.mxu0
      %895 = vmatprep.mubr.f32.mxu0 0.0
      %896 = vmatmul.mubr.f32.gmra.mxu0 %v718
      %v897 = vpop.f32.mrf.mxu0
      %v898 = vadd.f32 %v687, %v897
      %v899 = vpop.f32.mrf.mxu0
      %900 = vmatprep.mubr.f32.mxu0 0.0
      %901 = vmatmul.mubr.f32.gmra.mxu0 %v721
      %v902 = vpop.f32.mrf.mxu0
      %v903 = vadd.f32 %v687, %v902
      %v904 = vpop.f32.mrf.mxu0
      %905 = vmatprep.mubr.f32.mxu0 0.0
      %906 = vmatmul.mubr.f32.gmra.mxu0 %v724
      %v907 = vpop.f32.mrf.mxu0
      %v908 = vadd.f32 %v687, %v907
      %v909 = vpop.f32.mrf.mxu0
      %910 = vmatprep.mubr.f32.mxu0 0.0
      %911 = vmatmul.mubr.f32.gmra.mxu0 %v727
      %v912 = vpop.f32.mrf.mxu0
      %v913 = vadd.f32 %v687, %v912
      %v914 = vpop.f32.mrf.mxu0
      %915 = vmatprep.mubr.f32.mxu0 0.0
      %916 = vmatmul.mubr.f32.gmra.mxu0 %v730
      %v917 = vpop.f32.mrf.mxu0
      %v918 = vadd.f32 %v687, %v917
      %v919 = vpop.f32.mrf.mxu0
      %920 = vmatprep.mubr.f32.mxu0 0.0
      %921 = vmatmul.mubr.f32.gmra.mxu0 %v733
      %v922 = vpop.f32.mrf.mxu0
      %v923 = vadd.f32 %v687, %v922
      %v924 = vpop.f32.mrf.mxu0
      %925 = vmatprep.mubr.f32.mxu0 0.0
      %926 = vmatmul.mubr.f32.gmra.mxu0 %v736
      %v927 = vpop.f32.mrf.mxu0
      %v928 = vadd.f32 %v687, %v927
      %v929 = vpop.f32.mrf.mxu0
      %930 = vmatprep.mubr.f32.mxu0 0.0
      %931 = vmatmul.mubr.f32.gmra.mxu0 %v739
      %v932 = vpop.f32.mrf.mxu0
      %v933 = vadd.f32 %v687, %v932
      %v934 = vpop.f32.mrf.mxu0
      %935 = vmatprep.mubr.f32.mxu0 0.0
      %936 = vmatmul.mubr.f32.gmra.mxu0 %v742
      %v937 = vpop.f32.mrf.mxu0
      %v938 = vadd.f32 %v687, %v937
      %v939 = vpop.f32.mrf.mxu0
      %940 = vmatprep.mubr.f32.mxu0 0.0
      %941 = vmatmul.mubr.f32.gmra.mxu0 %v745
      %v942 = vpop.f32.mrf.mxu0
      %v943 = vadd.f32 %v687, %v942
      %v944 = vpop.f32.mrf.mxu0
      %945 = vmatprep.mubr.f32.mxu0 0.0
      %946 = vmatmul.mubr.f32.gmra.mxu0 %v748
      %v947 = vpop.f32.mrf.mxu0
      %v948 = vadd.f32 %v687, %v947
      %v949 = vpop.f32.mrf.mxu0
      %950 = vmatprep.mubr.f32.mxu0 0.0
      %951 = vmatmul.mubr.f32.gmra.mxu0 %v751
      %v952 = vpop.f32.mrf.mxu0
      %v953 = vadd.f32 %v687, %v952
      %v954 = vpop.f32.mrf.mxu0
      %955 = vmatprep.mubr.f32.mxu0 0.0
      %956 = vmatmul.mubr.f32.gmra.mxu0 %v754
      %v957 = vpop.f32.mrf.mxu0
      %v958 = vadd.f32 %v687, %v957
      %v959 = vpop.f32.mrf.mxu0
      %960 = vmatprep.mubr.f32.mxu0 0.0
      %961 = vmatmul.mubr.f32.gmra.mxu0 %v757
      %v962 = vpop.f32.mrf.mxu0
      %v963 = vadd.f32 %v687, %v962
      %v964 = vpop.f32.mrf.mxu0
      %965 = vmatprep.mubr.f32.mxu0 0.0
      %966 = vmatmul.mubr.f32.gmra.mxu0 %v760
      %v967 = vpop.f32.mrf.mxu0
      %v968 = vadd.f32 %v687, %v967
      %v969 = vpop.f32.mrf.mxu0
      %970 = vmatprep.mubr.f32.mxu0 0.0
      %971 = vmatmul.mubr.f32.gmra.mxu0 %v763
      %v972 = vpop.f32.mrf.mxu0
      %v973 = vadd.f32 %v687, %v972
      %v974 = vpop.f32.mrf.mxu0
      %975 = vmatprep.mubr.f32.mxu0 0.0
      %976 = vmatmul.mubr.f32.gmra.mxu0 %v766
      %v977 = vpop.f32.mrf.mxu0
      %v978 = vadd.f32 %v687, %v977
      %v979 = vpop.f32.mrf.mxu0
      %980 = vmatprep.mubr.f32.mxu0 0.0
      %981 = vmatmul.mubr.f32.gmra.mxu0 %v769
      %v982 = vpop.f32.mrf.mxu0
      %v983 = vadd.f32 %v687, %v982
      %v984 = vpop.f32.mrf.mxu0
      %985 = vmatprep.mubr.f32.mxu0 0.0
      %986 = vmatmul.mubr.f32.gmra.mxu0 %v772
      %v987 = vpop.f32.mrf.mxu0
      %v988 = vadd.f32 %v687, %v987
      %v989 = vpop.f32.mrf.mxu0
      %990 = vmatprep.mubr.f32.mxu0 0.0
      %991 = vmatmul.mubr.f32.gmra.mxu0 %v775
      %v992 = vpop.f32.mrf.mxu0
      %v993 = vadd.f32 %v687, %v992
      %v994 = vpop.f32.mrf.mxu0
      %995 = vmatprep.mubr.f32.mxu0 0.0
      %996 = vmatmul.mubr.f32.gmra.mxu0 %v778
      %v997 = vpop.f32.mrf.mxu0
      %v998 = vadd.f32 %v687, %v997
      %v999 = vpop.f32.mrf.mxu0
      %1000 = vmatprep.mubr.f32.mxu0 0.0
      %1001 = vmatmul.mubr.f32.gmra.mxu0 %v781
      %v1002 = vpop.f32.mrf.mxu0
      %v1003 = vadd.f32 %v687, %v1002
      %v1004 = vpop.f32.mrf.mxu0
      %1005 = vmatprep.mubr.f32.mxu0 0.0
      %1006 = vmatmul.mubr.f32.gmra.mxu0 %v784
      %v1007 = vpop.f32.mrf.mxu0
      %v1008 = vadd.f32 %v687, %v1007
      %v1009 = vpop.f32.mrf.mxu0
      %1010 = vdwg.mxu0
      %v1011 = vmax.f32 %v853, 0.0
      %v1012 = vmax.f32 %v858, 0.0
      %v1013 = vmax.f32 %v863, 0.0
      %v1014 = vmax.f32 %v868, 0.0
      %v1015 = vmax.f32 %v873, 0.0
      %v1016 = vmax.f32 %v878, 0.0
      %v1017 = vmax.f32 %v883, 0.0
      %v1018 = vmax.f32 %v888, 0.0
      %v1019 = vmax.f32 %v893, 0.0
      %v1020 = vmax.f32 %v898, 0.0
      %v1021 = vmax.f32 %v903, 0.0
      %v1022 = vmax.f32 %v908, 0.0
      %v1023 = vmax.f32 %v913, 0.0
      %v1024 = vmax.f32 %v918, 0.0
      %v1025 = vmax.f32 %v923, 0.0
      %v1026 = vmax.f32 %v928, 0.0
      %v1027 = vmax.f32 %v933, 0.0
      %v1028 = vmax.f32 %v938, 0.0
      %v1029 = vmax.f32 %v943, 0.0
      %v1030 = vmax.f32 %v948, 0.0
      %v1031 = vmax.f32 %v953, 0.0
      %v1032 = vmax.f32 %v958, 0.0
      %v1033 = vmax.f32 %v963, 0.0
      %v1034 = vmax.f32 %v968, 0.0
      %v1035 = vmax.f32 %v973, 0.0
      %v1036 = vmax.f32 %v978, 0.0
      %v1037 = vmax.f32 %v983, 0.0
      %v1038 = vmax.f32 %v988, 0.0
      %v1039 = vmax.f32 %v993, 0.0
      %v1040 = vmax.f32 %v998, 0.0
      %v1041 = vmax.f32 %v1003, 0.0
      %v1042 = vmax.f32 %v1008, 0.0
      %vm1043 = vcmask 130048
      %v1044 = vsel %vm1043, %v1011, -inf
      %1045 = vmax.xlane.f32.xlu0 %v1044
      %v1046 = vpop.xlane.xlu0 %1045
      %v1047 = vsel %vm1043, %v1012, -inf
      %1048 = vmax.xlane.f32.xlu0 %v1047
      %v1049 = vpop.xlane.xlu0 %1048
      %v1050 = vsel %vm1043, %v1013, -inf
      %1051 = vmax.xlane.f32.xlu0 %v1050
      %v1052 = vpop.xlane.xlu0 %1051
      %v1053 = vsel %vm1043, %v1014, -inf
      %1054 = vmax.xlane.f32.xlu0 %v1053
      %v1055 = vpop.xlane.xlu0 %1054
      %v1056 = vsel %vm1043, %v1015, -inf
      %1057 = vmax.xlane.f32.xlu0 %v1056
      %v1058 = vpop.xlane.xlu0 %1057
      %v1059 = vsel %vm1043, %v1016, -inf
      %1060 = vmax.xlane.f32.xlu0 %v1059
      %v1061 = vpop.xlane.xlu0 %1060
      %v1062 = vsel %vm1043, %v1017, -inf
      %1063 = vmax.xlane.f32.xlu0 %v1062
      %v1064 = vpop.xlane.xlu0 %1063
      %v1065 = vsel %vm1043, %v1018, -inf
      %1066 = vmax.xlane.f32.xlu0 %v1065
      %v1067 = vpop.xlane.xlu0 %1066
      %v1068 = vsel %vm1043, %v1019, -inf
      %1069 = vmax.xlane.f32.xlu0 %v1068
      %v1070 = vpop.xlane.xlu0 %1069
      %v1071 = vsel %vm1043, %v1020, -inf
      %1072 = vmax.xlane.f32.xlu0 %v1071
      %v1073 = vpop.xlane.xlu0 %1072
      %v1074 = vsel %vm1043, %v1021, -inf
      %1075 = vmax.xlane.f32.xlu0 %v1074
      %v1076 = vpop.xlane.xlu0 %1075
      %v1077 = vsel %vm1043, %v1022, -inf
      %1078 = vmax.xlane.f32.xlu0 %v1077
      %v1079 = vpop.xlane.xlu0 %1078
      %v1080 = vsel %vm1043, %v1023, -inf
      %1081 = vmax.xlane.f32.xlu0 %v1080
      %v1082 = vpop.xlane.xlu0 %1081
      %v1083 = vsel %vm1043, %v1024, -inf
      %1084 = vmax.xlane.f32.xlu0 %v1083
      %v1085 = vpop.xlane.xlu0 %1084
      %v1086 = vsel %vm1043, %v1025, -inf
      %1087 = vmax.xlane.f32.xlu0 %v1086
      %v1088 = vpop.xlane.xlu0 %1087
      %v1089 = vsel %vm1043, %v1026, -inf
      %1090 = vmax.xlane.f32.xlu0 %v1089
      %v1091 = vpop.xlane.xlu0 %1090
      %v1092 = vsel %vm1043, %v1027, -inf
      %1093 = vmax.xlane.f32.xlu0 %v1092
      %v1094 = vpop.xlane.xlu0 %1093
      %v1095 = vsel %vm1043, %v1028, -inf
      %1096 = vmax.xlane.f32.xlu0 %v1095
      %v1097 = vpop.xlane.xlu0 %1096
      %v1098 = vsel %vm1043, %v1029, -inf
      %1099 = vmax.xlane.f32.xlu0 %v1098
      %v1100 = vpop.xlane.xlu0 %1099
      %v1101 = vsel %vm1043, %v1030, -inf
      %1102 = vmax.xlane.f32.xlu0 %v1101
      %v1103 = vpop.xlane.xlu0 %1102
      %v1104 = vsel %vm1043, %v1031, -inf
      %1105 = vmax.xlane.f32.xlu0 %v1104
      %v1106 = vpop.xlane.xlu0 %1105
      %v1107 = vsel %vm1043, %v1032, -inf
      %1108 = vmax.xlane.f32.xlu0 %v1107
      %v1109 = vpop.xlane.xlu0 %1108
      %v1110 = vsel %vm1043, %v1033, -inf
      %1111 = vmax.xlane.f32.xlu0 %v1110
      %v1112 = vpop.xlane.xlu0 %1111
      %v1113 = vsel %vm1043, %v1034, -inf
      %1114 = vmax.xlane.f32.xlu0 %v1113
      %v1115 = vpop.xlane.xlu0 %1114
      %v1116 = vsel %vm1043, %v1035, -inf
      %1117 = vmax.xlane.f32.xlu0 %v1116
      %v1118 = vpop.xlane.xlu0 %1117
      %v1119 = vsel %vm1043, %v1036, -inf
      %1120 = vmax.xlane.f32.xlu0 %v1119
      %v1121 = vpop.xlane.xlu0 %1120
      %v1122 = vsel %vm1043, %v1037, -inf
      %1123 = vmax.xlane.f32.xlu0 %v1122
      %v1124 = vpop.xlane.xlu0 %1123
      %v1125 = vsel %vm1043, %v1038, -inf
      %1126 = vmax.xlane.f32.xlu0 %v1125
      %v1127 = vpop.xlane.xlu0 %1126
      %v1128 = vsel %vm1043, %v1039, -inf
      %1129 = vmax.xlane.f32.xlu0 %v1128
      %v1130 = vpop.xlane.xlu0 %1129
      %v1131 = vsel %vm1043, %v1040, -inf
      %1132 = vmax.xlane.f32.xlu0 %v1131
      %v1133 = vpop.xlane.xlu0 %1132
      %v1134 = vsel %vm1043, %v1041, -inf
      %1135 = vmax.xlane.f32.xlu0 %v1134
      %v1136 = vpop.xlane.xlu0 %1135
      %v1137 = vsel %vm1043, %v1042, -inf
      %1138 = vmax.xlane.f32.xlu0 %v1137
      %v1139 = vpop.xlane.xlu0 %1138
      %v1140 = vsub.f32 %v1011, %v1046
      %v1141 = vsub.f32 %v1012, %v1049
      %v1142 = vsub.f32 %v1013, %v1052
      %v1143 = vsub.f32 %v1014, %v1055
      %v1144 = vsub.f32 %v1015, %v1058
      %v1145 = vsub.f32 %v1016, %v1061
      %v1146 = vsub.f32 %v1017, %v1064
      %v1147 = vsub.f32 %v1018, %v1067
      %v1148 = vsub.f32 %v1019, %v1070
      %v1149 = vsub.f32 %v1020, %v1073
      %v1150 = vsub.f32 %v1021, %v1076
      %v1151 = vsub.f32 %v1022, %v1079
      %v1152 = vsub.f32 %v1023, %v1082
      %v1153 = vsub.f32 %v1024, %v1085
      %v1154 = vsub.f32 %v1025, %v1088
      %v1155 = vsub.f32 %v1026, %v1091
      %v1156 = vsub.f32 %v1027, %v1094
      %v1157 = vsub.f32 %v1028, %v1097
      %v1158 = vsub.f32 %v1029, %v1100
      %v1159 = vsub.f32 %v1030, %v1103
      %v1160 = vsub.f32 %v1031, %v1106
      %v1161 = vsub.f32 %v1032, %v1109
      %v1162 = vsub.f32 %v1033, %v1112
      %v1163 = vsub.f32 %v1034, %v1115
      %v1164 = vsub.f32 %v1035, %v1118
      %v1165 = vsub.f32 %v1036, %v1121
      %v1166 = vsub.f32 %v1037, %v1124
      %v1167 = vsub.f32 %v1038, %v1127
      %v1168 = vsub.f32 %v1039, %v1130
      %v1169 = vsub.f32 %v1040, %v1133
      %v1170 = vsub.f32 %v1041, %v1136
      %v1171 = vsub.f32 %v1042, %v1139
      %v1172 = vmul.f32 %v1140, 1.442695
      %v1173 = vpow.pop %v1172
      %v1174 = vmul.f32 %v1141, 1.442695
      %v1175 = vpow.pop %v1174
      %v1176 = vmul.f32 %v1142, 1.442695
      %v1177 = vpow.pop %v1176
      %v1178 = vmul.f32 %v1143, 1.442695
      %v1179 = vpow.pop %v1178
      %v1180 = vmul.f32 %v1144, 1.442695
      %v1181 = vpow.pop %v1180
      %v1182 = vmul.f32 %v1145, 1.442695
      %v1183 = vpow.pop %v1182
      %v1184 = vmul.f32 %v1146, 1.442695
      %v1185 = vpow.pop %v1184
      %v1186 = vmul.f32 %v1147, 1.442695
      %v1187 = vpow.pop %v1186
      %v1188 = vmul.f32 %v1148, 1.442695
      %v1189 = vpow.pop %v1188
      %v1190 = vmul.f32 %v1149, 1.442695
      %v1191 = vpow.pop %v1190
      %v1192 = vmul.f32 %v1150, 1.442695
      %v1193 = vpow.pop %v1192
      %v1194 = vmul.f32 %v1151, 1.442695
      %v1195 = vpow.pop %v1194
      %v1196 = vmul.f32 %v1152, 1.442695
      %v1197 = vpow.pop %v1196
      %v1198 = vmul.f32 %v1153, 1.442695
      %v1199 = vpow.pop %v1198
      %v1200 = vmul.f32 %v1154, 1.442695
      %v1201 = vpow.pop %v1200
      %v1202 = vmul.f32 %v1155, 1.442695
      %v1203 = vpow.pop %v1202
      %v1204 = vmul.f32 %v1156, 1.442695
      %v1205 = vpow.pop %v1204
      %v1206 = vmul.f32 %v1157, 1.442695
      %v1207 = vpow.pop %v1206
      %v1208 = vmul.f32 %v1158, 1.442695
      %v1209 = vpow.pop %v1208
      %v1210 = vmul.f32 %v1159, 1.442695
      %v1211 = vpow.pop %v1210
      %v1212 = vmul.f32 %v1160, 1.442695
      %v1213 = vpow.pop %v1212
      %v1214 = vmul.f32 %v1161, 1.442695
      %v1215 = vpow.pop %v1214
      %v1216 = vmul.f32 %v1162, 1.442695
      %v1217 = vpow.pop %v1216
      %v1218 = vmul.f32 %v1163, 1.442695
      %v1219 = vpow.pop %v1218
      %v1220 = vmul.f32 %v1164, 1.442695
      %v1221 = vpow.pop %v1220
      %v1222 = vmul.f32 %v1165, 1.442695
      %v1223 = vpow.pop %v1222
      %v1224 = vmul.f32 %v1166, 1.442695
      %v1225 = vpow.pop %v1224
      %v1226 = vmul.f32 %v1167, 1.442695
      %v1227 = vpow.pop %v1226
      %v1228 = vmul.f32 %v1168, 1.442695
      %v1229 = vpow.pop %v1228
      %v1230 = vmul.f32 %v1169, 1.442695
      %v1231 = vpow.pop %v1230
      %v1232 = vmul.f32 %v1170, 1.442695
      %v1233 = vpow.pop %v1232
      %v1234 = vmul.f32 %v1171, 1.442695
      %v1235 = vpow.pop %v1234
      %v1236 = vld [vmem:[%s269] sm:$0xff]
      %v1237 = vld [vmem:[%s269 + $0x8] sm:$0xff]
      %v1238 = vld [vmem:[%s269 + $0x10] sm:$0xff]
      %v1239 = vld [vmem:[%s269 + $0x18] sm:$0xff]
      %v1240 = vld [vmem:[%s269 + $0x20] sm:$0xff]
      %v1241 = vld [vmem:[%s269 + $0x28] sm:$0xff]
      %v1242 = vld [vmem:[%s269 + $0x30] sm:$0xff]
      %v1243 = vld [vmem:[%s269 + $0x38] sm:$0xff]
      %v1244 = vld [vmem:[%s269 + $0x40] sm:$0xff]
      %v1245 = vld [vmem:[%s269 + $0x48] sm:$0xff]
      %v1246 = vld [vmem:[%s269 + $0x50] sm:$0xff]
      %v1247 = vld [vmem:[%s269 + $0x58] sm:$0xff]
      %v1248 = vld [vmem:[%s269 + $0x60] sm:$0xff]
      %v1249 = vld [vmem:[%s269 + $0x68] sm:$0xff]
      %v1250 = vld [vmem:[%s269 + $0x70] sm:$0xff]
      %v1251 = vld [vmem:[%s269 + $0x78] sm:$0xff]
      %v1252 = vld [vmem:[%s269 + $0x80] sm:$0xff]
      %v1253 = vld [vmem:[%s269 + $0x88] sm:$0xff]
      %v1254 = vld [vmem:[%s269 + $0x90] sm:$0xff]
      %v1255 = vld [vmem:[%s269 + $0x98] sm:$0xff]
      %v1256 = vld [vmem:[%s269 + $0xa0] sm:$0xff]
      %v1257 = vld [vmem:[%s269 + $0xa8] sm:$0xff]
      %v1258 = vld [vmem:[%s269 + $0xb0] sm:$0xff]
      %v1259 = vld [vmem:[%s269 + $0xb8] sm:$0xff]
      %v1260 = vld [vmem:[%s269 + $0xc0] sm:$0xff]
      %v1261 = vld [vmem:[%s269 + $0xc8] sm:$0xff]
      %v1262 = vld [vmem:[%s269 + $0xd0] sm:$0xff]
      %v1263 = vld [vmem:[%s269 + $0xd8] sm:$0xff]
      %v1264 = vld [vmem:[%s269 + $0xe0] sm:$0xff]
      %v1265 = vld [vmem:[%s269 + $0xe8] sm:$0xff]
      %v1266 = vld [vmem:[%s269 + $0xf0] sm:$0xff]
      %v1267 = vld [vmem:[%s269 + $0xf8] sm:$0xff]
      %v1268 = vmul.f32 %v1173, %v1236
      %v1269 = vmul.f32 %v1175, %v1237
      %v1270 = vmul.f32 %v1177, %v1238
      %v1271 = vmul.f32 %v1179, %v1239
      %v1272 = vmul.f32 %v1181, %v1240
      %v1273 = vmul.f32 %v1183, %v1241
      %v1274 = vmul.f32 %v1185, %v1242
      %v1275 = vmul.f32 %v1187, %v1243
      %v1276 = vmul.f32 %v1189, %v1244
      %v1277 = vmul.f32 %v1191, %v1245
      %v1278 = vmul.f32 %v1193, %v1246
      %v1279 = vmul.f32 %v1195, %v1247
      %v1280 = vmul.f32 %v1197, %v1248
      %v1281 = vmul.f32 %v1199, %v1249
      %v1282 = vmul.f32 %v1201, %v1250
      %v1283 = vmul.f32 %v1203, %v1251
      %v1284 = vmul.f32 %v1205, %v1252
      %v1285 = vmul.f32 %v1207, %v1253
      %v1286 = vmul.f32 %v1209, %v1254
      %v1287 = vmul.f32 %v1211, %v1255
      %v1288 = vmul.f32 %v1213, %v1256
      %v1289 = vmul.f32 %v1215, %v1257
      %v1290 = vmul.f32 %v1217, %v1258
      %v1291 = vmul.f32 %v1219, %v1259
      %v1292 = vmul.f32 %v1221, %v1260
      %v1293 = vmul.f32 %v1223, %v1261
      %v1294 = vmul.f32 %v1225, %v1262
      %v1295 = vmul.f32 %v1227, %v1263
      %v1296 = vmul.f32 %v1229, %v1264
      %v1297 = vmul.f32 %v1231, %v1265
      %v1298 = vmul.f32 %v1233, %v1266
      %v1299 = vmul.f32 %v1235, %v1267
      %v1300 = vsel %vm1043, %v1268, 0.0
      %1301 = vadd.xlane.f32.xlu0 %v1300
      %v1302 = vpop.xlane.xlu0 %1301
      %v1303 = vsel %vm1043, %v1269, 0.0
      %1304 = vadd.xlane.f32.xlu0 %v1303
      %v1305 = vpop.xlane.xlu0 %1304
      %v1306 = vsel %vm1043, %v1270, 0.0
      %1307 = vadd.xlane.f32.xlu0 %v1306
      %v1308 = vpop.xlane.xlu0 %1307
      %v1309 = vsel %vm1043, %v1271, 0.0
      %1310 = vadd.xlane.f32.xlu0 %v1309
      %v1311 = vpop.xlane.xlu0 %1310
      %v1312 = vsel %vm1043, %v1272, 0.0
      %1313 = vadd.xlane.f32.xlu0 %v1312
      %v1314 = vpop.xlane.xlu0 %1313
      %v1315 = vsel %vm1043, %v1273, 0.0
      %1316 = vadd.xlane.f32.xlu0 %v1315
      %v1317 = vpop.xlane.xlu0 %1316
      %v1318 = vsel %vm1043, %v1274, 0.0
      %1319 = vadd.xlane.f32.xlu0 %v1318
      %v1320 = vpop.xlane.xlu0 %1319
      %v1321 = vsel %vm1043, %v1275, 0.0
      %1322 = vadd.xlane.f32.xlu0 %v1321
      %v1323 = vpop.xlane.xlu0 %1322
      %v1324 = vsel %vm1043, %v1276, 0.0
      %1325 = vadd.xlane.f32.xlu0 %v1324
      %v1326 = vpop.xlane.xlu0 %1325
      %v1327 = vsel %vm1043, %v1277, 0.0
      %1328 = vadd.xlane.f32.xlu0 %v1327
      %v1329 = vpop.xlane.xlu0 %1328
      %v1330 = vsel %vm1043, %v1278, 0.0
      %1331 = vadd.xlane.f32.xlu0 %v1330
      %v1332 = vpop.xlane.xlu0 %1331
      %v1333 = vsel %vm1043, %v1279, 0.0
      %1334 = vadd.xlane.f32.xlu0 %v1333
      %v1335 = vpop.xlane.xlu0 %1334
      %v1336 = vsel %vm1043, %v1280, 0.0
      %1337 = vadd.xlane.f32.xlu0 %v1336
      %v1338 = vpop.xlane.xlu0 %1337
      %v1339 = vsel %vm1043, %v1281, 0.0
      %1340 = vadd.xlane.f32.xlu0 %v1339
      %v1341 = vpop.xlane.xlu0 %1340
      %v1342 = vsel %vm1043, %v1282, 0.0
      %1343 = vadd.xlane.f32.xlu0 %v1342
      %v1344 = vpop.xlane.xlu0 %1343
      %v1345 = vsel %vm1043, %v1283, 0.0
      %1346 = vadd.xlane.f32.xlu0 %v1345
      %v1347 = vpop.xlane.xlu0 %1346
      %v1348 = vsel %vm1043, %v1284, 0.0
      %1349 = vadd.xlane.f32.xlu0 %v1348
      %v1350 = vpop.xlane.xlu0 %1349
      %v1351 = vsel %vm1043, %v1285, 0.0
      %1352 = vadd.xlane.f32.xlu0 %v1351
      %v1353 = vpop.xlane.xlu0 %1352
      %v1354 = vsel %vm1043, %v1286, 0.0
      %1355 = vadd.xlane.f32.xlu0 %v1354
      %v1356 = vpop.xlane.xlu0 %1355
      %v1357 = vsel %vm1043, %v1287, 0.0
      %1358 = vadd.xlane.f32.xlu0 %v1357
      %v1359 = vpop.xlane.xlu0 %1358
      %v1360 = vsel %vm1043, %v1288, 0.0
      %1361 = vadd.xlane.f32.xlu0 %v1360
      %v1362 = vpop.xlane.xlu0 %1361
      %v1363 = vsel %vm1043, %v1289, 0.0
      %1364 = vadd.xlane.f32.xlu0 %v1363
      %v1365 = vpop.xlane.xlu0 %1364
      %v1366 = vsel %vm1043, %v1290, 0.0
      %1367 = vadd.xlane.f32.xlu0 %v1366
      %v1368 = vpop.xlane.xlu0 %1367
      %v1369 = vsel %vm1043, %v1291, 0.0
      %1370 = vadd.xlane.f32.xlu0 %v1369
      %v1371 = vpop.xlane.xlu0 %1370
      %v1372 = vsel %vm1043, %v1292, 0.0
      %1373 = vadd.xlane.f32.xlu0 %v1372
      %v1374 = vpop.xlane.xlu0 %1373
      %v1375 = vsel %vm1043, %v1293, 0.0
      %1376 = vadd.xlane.f32.xlu0 %v1375
      %v1377 = vpop.xlane.xlu0 %1376
      %v1378 = vsel %vm1043, %v1294, 0.0
      %1379 = vadd.xlane.f32.xlu0 %v1378
      %v1380 = vpop.xlane.xlu0 %1379
      %v1381 = vsel %vm1043, %v1295, 0.0
      %1382 = vadd.xlane.f32.xlu0 %v1381
      %v1383 = vpop.xlane.xlu0 %1382
      %v1384 = vsel %vm1043, %v1296, 0.0
      %1385 = vadd.xlane.f32.xlu0 %v1384
      %v1386 = vpop.xlane.xlu0 %1385
      %v1387 = vsel %vm1043, %v1297, 0.0
      %1388 = vadd.xlane.f32.xlu0 %v1387
      %v1389 = vpop.xlane.xlu0 %1388
      %v1390 = vsel %vm1043, %v1298, 0.0
      %1391 = vadd.xlane.f32.xlu0 %v1390
      %v1392 = vpop.xlane.xlu0 %1391
      %v1393 = vsel %vm1043, %v1299, 0.0
      %1394 = vadd.xlane.f32.xlu0 %v1393
      %v1395 = vpop.xlane.xlu0 %1394
      %v1396 = vmax.f32 %v1302, 1e-12
      %v1397 = vmax.f32 %v1305, 1e-12
      %v1398 = vmax.f32 %v1308, 1e-12
      %v1399 = vmax.f32 %v1311, 1e-12
      %v1400 = vmax.f32 %v1314, 1e-12
      %v1401 = vmax.f32 %v1317, 1e-12
      %v1402 = vmax.f32 %v1320, 1e-12
      %v1403 = vmax.f32 %v1323, 1e-12
      %v1404 = vmax.f32 %v1326, 1e-12
      %v1405 = vmax.f32 %v1329, 1e-12
      %v1406 = vmax.f32 %v1332, 1e-12
      %v1407 = vmax.f32 %v1335, 1e-12
      %v1408 = vmax.f32 %v1338, 1e-12
      %v1409 = vmax.f32 %v1341, 1e-12
      %v1410 = vmax.f32 %v1344, 1e-12
      %v1411 = vmax.f32 %v1347, 1e-12
      %v1412 = vmax.f32 %v1350, 1e-12
      %v1413 = vmax.f32 %v1353, 1e-12
      %v1414 = vmax.f32 %v1356, 1e-12
      %v1415 = vmax.f32 %v1359, 1e-12
      %v1416 = vmax.f32 %v1362, 1e-12
      %v1417 = vmax.f32 %v1365, 1e-12
      %v1418 = vmax.f32 %v1368, 1e-12
      %v1419 = vmax.f32 %v1371, 1e-12
      %v1420 = vmax.f32 %v1374, 1e-12
      %v1421 = vmax.f32 %v1377, 1e-12
      %v1422 = vmax.f32 %v1380, 1e-12
      %v1423 = vmax.f32 %v1383, 1e-12
      %v1424 = vmax.f32 %v1386, 1e-12
      %v1425 = vmax.f32 %v1389, 1e-12
      %v1426 = vmax.f32 %v1392, 1e-12
      %v1427 = vmax.f32 %v1395, 1e-12
      %v1428 = vrcp.pop %v1396
      %v1429 = vmul.f32 %v1268, %v1428
      %v1430 = vrcp.pop %v1397
      %v1431 = vmul.f32 %v1269, %v1430
      %v1432 = vrcp.pop %v1398
      %v1433 = vmul.f32 %v1270, %v1432
      %v1434 = vrcp.pop %v1399
      %v1435 = vmul.f32 %v1271, %v1434
      %v1436 = vrcp.pop %v1400
      %v1437 = vmul.f32 %v1272, %v1436
      %v1438 = vrcp.pop %v1401
      %v1439 = vmul.f32 %v1273, %v1438
      %v1440 = vrcp.pop %v1402
      %v1441 = vmul.f32 %v1274, %v1440
      %v1442 = vrcp.pop %v1403
      %v1443 = vmul.f32 %v1275, %v1442
      %v1444 = vrcp.pop %v1404
      %v1445 = vmul.f32 %v1276, %v1444
      %v1446 = vrcp.pop %v1405
      %v1447 = vmul.f32 %v1277, %v1446
      %v1448 = vrcp.pop %v1406
      %v1449 = vmul.f32 %v1278, %v1448
      %v1450 = vrcp.pop %v1407
      %v1451 = vmul.f32 %v1279, %v1450
      %v1452 = vrcp.pop %v1408
      %v1453 = vmul.f32 %v1280, %v1452
      %v1454 = vrcp.pop %v1409
      %v1455 = vmul.f32 %v1281, %v1454
      %v1456 = vrcp.pop %v1410
      %v1457 = vmul.f32 %v1282, %v1456
      %v1458 = vrcp.pop %v1411
      %v1459 = vmul.f32 %v1283, %v1458
      %v1460 = vrcp.pop %v1412
      %v1461 = vmul.f32 %v1284, %v1460
      %v1462 = vrcp.pop %v1413
      %v1463 = vmul.f32 %v1285, %v1462
      %v1464 = vrcp.pop %v1414
      %v1465 = vmul.f32 %v1286, %v1464
      %v1466 = vrcp.pop %v1415
      %v1467 = vmul.f32 %v1287, %v1466
      %v1468 = vrcp.pop %v1416
      %v1469 = vmul.f32 %v1288, %v1468
      %v1470 = vrcp.pop %v1417
      %v1471 = vmul.f32 %v1289, %v1470
      %v1472 = vrcp.pop %v1418
      %v1473 = vmul.f32 %v1290, %v1472
      %v1474 = vrcp.pop %v1419
      %v1475 = vmul.f32 %v1291, %v1474
      %v1476 = vrcp.pop %v1420
      %v1477 = vmul.f32 %v1292, %v1476
      %v1478 = vrcp.pop %v1421
      %v1479 = vmul.f32 %v1293, %v1478
      %v1480 = vrcp.pop %v1422
      %v1481 = vmul.f32 %v1294, %v1480
      %v1482 = vrcp.pop %v1423
      %v1483 = vmul.f32 %v1295, %v1482
      %v1484 = vrcp.pop %v1424
      %v1485 = vmul.f32 %v1296, %v1484
      %v1486 = vrcp.pop %v1425
      %v1487 = vmul.f32 %v1297, %v1486
      %v1488 = vrcp.pop %v1426
      %v1489 = vmul.f32 %v1298, %v1488
      %v1490 = vrcp.pop %v1427
      %v1491 = vmul.f32 %v1299, %v1490
      %1492 = vst.msk [vmem:[%s275] sm:$0xff] %vm1043, %v1429
      %1493 = vst.msk [vmem:[%s275 + $0x8] sm:$0xff] %vm1043, %v1431
      %1494 = vst.msk [vmem:[%s275 + $0x10] sm:$0xff] %vm1043, %v1433
      %1495 = vst.msk [vmem:[%s275 + $0x18] sm:$0xff] %vm1043, %v1435
      %1496 = vst.msk [vmem:[%s275 + $0x20] sm:$0xff] %vm1043, %v1437
      %1497 = vst.msk [vmem:[%s275 + $0x28] sm:$0xff] %vm1043, %v1439
      %1498 = vst.msk [vmem:[%s275 + $0x30] sm:$0xff] %vm1043, %v1441
      %1499 = vst.msk [vmem:[%s275 + $0x38] sm:$0xff] %vm1043, %v1443
      %1500 = vst.msk [vmem:[%s275 + $0x40] sm:$0xff] %vm1043, %v1445
      %1501 = vst.msk [vmem:[%s275 + $0x48] sm:$0xff] %vm1043, %v1447
      %1502 = vst.msk [vmem:[%s275 + $0x50] sm:$0xff] %vm1043, %v1449
      %1503 = vst.msk [vmem:[%s275 + $0x58] sm:$0xff] %vm1043, %v1451
      %1504 = vst.msk [vmem:[%s275 + $0x60] sm:$0xff] %vm1043, %v1453
      %1505 = vst.msk [vmem:[%s275 + $0x68] sm:$0xff] %vm1043, %v1455
      %1506 = vst.msk [vmem:[%s275 + $0x70] sm:$0xff] %vm1043, %v1457
      %1507 = vst.msk [vmem:[%s275 + $0x78] sm:$0xff] %vm1043, %v1459
      %1508 = vst.msk [vmem:[%s275 + $0x80] sm:$0xff] %vm1043, %v1461
      %1509 = vst.msk [vmem:[%s275 + $0x88] sm:$0xff] %vm1043, %v1463
      %1510 = vst.msk [vmem:[%s275 + $0x90] sm:$0xff] %vm1043, %v1465
      %1511 = vst.msk [vmem:[%s275 + $0x98] sm:$0xff] %vm1043, %v1467
      %1512 = vst.msk [vmem:[%s275 + $0xa0] sm:$0xff] %vm1043, %v1469
      %1513 = vst.msk [vmem:[%s275 + $0xa8] sm:$0xff] %vm1043, %v1471
      %1514 = vst.msk [vmem:[%s275 + $0xb0] sm:$0xff] %vm1043, %v1473
      %1515 = vst.msk [vmem:[%s275 + $0xb8] sm:$0xff] %vm1043, %v1475
      %1516 = vst.msk [vmem:[%s275 + $0xc0] sm:$0xff] %vm1043, %v1477
      %1517 = vst.msk [vmem:[%s275 + $0xc8] sm:$0xff] %vm1043, %v1479
      %1518 = vst.msk [vmem:[%s275 + $0xd0] sm:$0xff] %vm1043, %v1481
      %1519 = vst.msk [vmem:[%s275 + $0xd8] sm:$0xff] %vm1043, %v1483
      %1520 = vst.msk [vmem:[%s275 + $0xe0] sm:$0xff] %vm1043, %v1485
      %1521 = vst.msk [vmem:[%s275 + $0xe8] sm:$0xff] %vm1043, %v1487
      %1522 = vst.msk [vmem:[%s275 + $0xf0] sm:$0xff] %vm1043, %v1489
      %1523 = vst.msk [vmem:[%s275 + $0xf8] sm:$0xff] %vm1043, %v1491
      %s1524 = smul.u32 32, %s17
      %p1525 = scmp.lt.s32.totalorder %s1524, 63
      %s1526 = scalar_select %p1525, %s1524, 63
      %s1527 = smul.addr %s1526, 8
      %s1528 = scalar_lea.vmem %s6, %s1527
      // Predicated region
      $region45: #{anet_forward.1} parent=43 // pred_check
        %p1529 = pneg %p171
      $region46: #{anet_forward.1} parent=43 // pred_check_branch
        %1531 = sbr.rel (%p1529) target = $region48
      $region47: #{anet_forward.1} parent=43 // pred_region
        %s1532 = smul.u32 32, %s17
      $region48: #{anet_forward.1} parent=43 // pred_fallthru
        _
    $region44: #{anet_forward.1} parent=5 // pred_fallthru
      _
    %p1533 = scmp.le.s32.totalorder 2, %s12
    // Predicated region
    $region49: #{anet_forward.1} parent=5 // pred_check
      %p1534 = pneg %p1533
    $region50: #{anet_forward.1} parent=5 // pred_check_branch
      %1536 = sbr.rel (%p1534) target = $region52
    $region51: #{anet_forward.1} parent=5 // pred_region
      %s1537 = ssub.s32 %s12, 2
      // Predicated region
      $region53: #{anet_forward.1} parent=51 // pred_check
        %p1538 = pneg %p177
      $region54: #{anet_forward.1} parent=51 // pred_check_branch
        %1540 = sbr.rel (%p1538) target = $region56
      $region55: #{anet_forward.1} parent=51 // pred_region
        %s1541 = smul.u32 32, %s18
        %p1542 = scmp.lt.s32.totalorder %s1541, 63
        %s1543 = scalar_select %p1542, %s1541, 63
        %s1544 = smul.addr %s1543, 8
        %s1545 = scalar_lea.vmem %s6, %s1544
      $region56: #{anet_forward.1} parent=51 // pred_fallthru
        _
    $region52: #{anet_forward.1} parent=5 // pred_fallthru
      _
  $region6: #{anet_forward.1} parent=0 // loop_footer
    %s16 = sadd.s32 1, %s12
  $region7: #{anet_forward.1} parent=0 // loop_footer_branch
    %11 = sbr.rel target = $region3
  $region8: #{anet_forward.1} parent=0 // loop_exit
    _

</llo_original>
